<compile_context>
chip_gen: v7x
topology: tpu7x:2x2x1
jax: 0.10.0
libtpu: 0.0.40
codegen_flags: <defaults>
</compile_context>

<pallas_src>
import jax
import jax.numpy as jnp
from jax import lax
from jax.experimental import pallas as pl
from jax.experimental.pallas import tpu as pltpu

# ---------------- small synthetic hyper-parameters (consistent with the module) --------
B = 2            # batch
BP = 8           # sublane-padded batch carried inside the kernel
D = 8            # number of objects  (x is [B, D, K])
K = 16           # per-object feature size
SEQ = 8          # question length
QDICT = 20       # args.qdict_size        -> embedding vocab = QDICT + 1
VOCAB = QDICT + 1
VOCAB_PAD = 24   # vocab padded to a sublane multiple for the packed slab
ADICT = 10       # args.adict_size        -> rl_out_size
EMBED = 32       # hyp['lstm_word_emb']
HIDDEN = 32      # hyp['lstm_hidden'] == qst_size
RL_IN = 2 * K    # hyp['rl_in_size']  (concat of x_i, x_j)
G1, G2 = 64, 64  # hyp['g_layers']
F1, F2 = 64, 64  # hyp['f_fc1'], hyp['f_fc2']
QIP = 0          # hyp['question_injection_position'] == 0 ("original DeepMind model")
LANES = 128      # lane-dense width used for every packed weight / activation
OUT_PAD = 128    # lane-padded output width (sliced to ADICT in the wrapper)

assert 4 * HIDDEN == LANES
assert D & (D - 1) == 0
LOG_D = D.bit_length() - 1            # 3
LOG_DD = 2 * LOG_D                    # 6
P = B * D * D                         # 128 pair rows

# ---------------- packed-slab row layout (every chunk starts on an 8-row boundary) ------
OFF_IH = 0                                   # fused emb @ W_ih      [VOCAB_PAD, 128]
OFF_WHH = OFF_IH + VOCAB_PAD                 # W_hh                  [HIDDEN,    128]
OFF_BL = OFF_WHH + HIDDEN                    # b_ih + b_hh (row 0)   [8,         128]
OFF_WG0 = OFF_BL + 8                         # Wg0 (cols padded)     [2K+H,      128]
OFF_BG0 = OFF_WG0 + (RL_IN + HIDDEN)         # bg0 (row 0)           [8,         128]
OFF_WG1 = OFF_BG0 + 8                        # Wg1 (rows+cols pad)   [128,       128]
OFF_BG1 = OFF_WG1 + LANES                    # bg1                   [8,         128]
OFF_WF1 = OFF_BG1 + 8                        # Wf1                   [128,       128]
OFF_BF1 = OFF_WF1 + LANES                    # bf1                   [8,         128]
OFF_WF2 = OFF_BF1 + 8                        # Wf2                   [128,       128]
OFF_BF2 = OFF_WF2 + LANES                    # bf2                   [8,         128]
OFF_WF3 = OFF_BF2 + 8                        # Wf3                   [128,       128]
OFF_BF3 = OFF_WF3 + LANES                    # bf3                   [8,         128]
SLAB_ROWS = OFF_BF3 + 8                      # 680 rows x 128 lanes x f32 ~= 348 KiB


# ------------------------------- fused Pallas kernel ------------------------------------
def rn_kernel(idx_ref, x_ref, slab_ref, out_ref):
    """Entire RN forward.

    idx_ref:  [SEQ*BP, 1] int32 time-major, sublane-padded (row t*BP + b = qst_idxs[b, t])
    x_ref:    [B*D, K]    flattened image objects
    slab_ref: [SLAB_ROWS, 128] packed, lane-dense parameters
    out_ref:  [BP, OUT_PAD]
    """
    f32 = jnp.float32
    H = HIDDEN

    # ---- recover packed parameters (static, sublane-aligned slices) ----
    fused_ih = slab_ref[OFF_IH:OFF_IH + VOCAB_PAD, :]            # [24, 128]
    w_hh = slab_ref[OFF_WHH:OFF_WHH + HIDDEN, :]                 # [32, 128]
    b_lstm = slab_ref[OFF_BL:OFF_BL + 1, :]                      # [1, 128]
    wg0_j = slab_ref[OFF_WG0:OFF_WG0 + K, :]                     # [16, 128]
    wg0_i = slab_ref[OFF_WG0 + K:OFF_WG0 + 2 * K, :]             # [16, 128]
    wg0_q = slab_ref[OFF_WG0 + 2 * K:OFF_WG0 + 2 * K + H, :]     # [32, 128]
    bg0 = slab_ref[OFF_BG0:OFF_BG0 + 1, :]
    wg1 = slab_ref[OFF_WG1:OFF_WG1 + LANES, :]                   # [128, 128]
    bg1 = slab_ref[OFF_BG1:OFF_BG1 + 1, :]
    wf1 = slab_ref[OFF_WF1:OFF_WF1 + LANES, :]
    bf1 = slab_ref[OFF_BF1:OFF_BF1 + 1, :]
    wf2 = slab_ref[OFF_WF2:OFF_WF2 + LANES, :]
    bf2 = slab_ref[OFF_BF2:OFF_BF2 + 1, :]
    wf3 = slab_ref[OFF_WF3:OFF_WF3 + LANES, :]
    bf3 = slab_ref[OFF_BF3:OFF_BF3 + 1, :]

    # ---- embedding gather fused with LSTM input projection (one matmul) ----
    idx = idx_ref[...]                                           # [SEQ*BP, 1] int32
    vocab_iota = lax.broadcasted_iota(jnp.int32, (SEQ * BP, VOCAB_PAD), 1)
    onehot = (idx == vocab_iota).astype(f32)                     # [64, 24]
    xp = jnp.dot(onehot, fused_ih, preferred_element_type=f32) + b_lstm   # [64, 128]

    # ---- LSTM recurrence (statically unrolled, SEQ == 8) ----
    h = jnp.zeros((BP, H), f32)
    c = jnp.zeros((BP, H), f32)
    for t in range(SEQ):
        gates = xp[t * BP:(t + 1) * BP, :] + jnp.dot(h, w_hh,
                                                     preferred_element_type=f32)
        sg = jax.nn.sigmoid(gates)        # full (8,128) vreg
        tg = jnp.tanh(gates)              # full vreg
        c = sg[:, H:2 * H] * c + sg[:, 0:H] * tg[:, 2 * H:3 * H]
        h = sg[:, 3 * H:4 * H] * jnp.tanh(c)
    # h: [BP, HIDDEN]; rows >= B are padding (never selected below)

    # ---- relational g-MLP with factored first layer (QIP == 0) ----
    # pairs@Wg0 == x[b,j]@Wg0[:K] + x[b,i]@Wg0[K:2K] + qst[b]@Wg0[2K:]
    x = x_ref[...]                                               # [B*D, K]
    a = jnp.dot(x, wg0_j, preferred_element_type=f32)            # [16, 128], indexed by j
    bm = jnp.dot(x, wg0_i, preferred_element_type=f32)           # [16, 128], indexed by i
    q = jnp.dot(h, wg0_q, preferred_element_type=f32) + bg0      # [BP, 128]

    # pair expansion via 0/1 selection matmuls (stays 2-D, lane/sublane dense)
    r_a = lax.broadcasted_iota(jnp.int32, (P, B * D), 0)
    s_a = lax.broadcasted_iota(jnp.int32, (P, B * D), 1)
    b_of_r = r_a >> LOG_DD
    i_of_r = (r_a >> LOG_D) & (D - 1)
    j_of_r = r_a & (D - 1)
    sel_j = (s_a == b_of_r * D + j_of_r).astype(f32)             # picks x-row b*D + j
    sel_i = (s_a == b_of_r * D + i_of_r).astype(f32)             # picks x-row b*D + i
    r_q = lax.broadcasted_iota(jnp.int32, (P, BP), 0)
    s_q = lax.broadcasted_iota(jnp.int32, (P, BP), 1)
    sel_q = (s_q == (r_q >> LOG_DD)).astype(f32)                 # picks question-row b

    h1 = (jnp.dot(sel_j, a, preferred_element_type=f32)
          + jnp.dot(sel_i, bm, preferred_element_type=f32)
          + jnp.dot(sel_q, q, preferred_element_type=f32))       # [128, 128]
    h1 = jnp.maximum(h1, 0.0)

    h2 = jnp.maximum(jnp.dot(h1, wg1, preferred_element_type=f32) + bg1, 0.0)

    # per-batch pair-sum as a [BP, P] ones-selection matmul (no reshape relayouts)
    r_s = lax.broadcasted_iota(jnp.int32, (BP, P), 0)
    s_s = lax.broadcasted_iota(jnp.int32, (BP, P), 1)
    sum_sel = (r_s == (s_s >> LOG_DD)).astype(f32)
    x_g = jnp.dot(sum_sel, h2, preferred_element_type=f32)       # [BP, 128]

    # ---- f-MLP (dropout == identity in eval mode) ----
    f1 = jnp.maximum(jnp.dot(x_g, wf1, preferred_element_type=f32) + bf1, 0.0)
    f2 = jnp.maximum(jnp.dot(f1, wf2, preferred_element_type=f32) + bf2, 0.0)
    out_ref[...] = jnp.dot(f2, wf3, preferred_element_type=f32) + bf3


# --------------------------------- param packing ----------------------------------------
def pack_params(p):
    """Pack all weights/biases into one lane-dense f32 slab [SLAB_ROWS, 128]."""
    slab = jnp.zeros((SLAB_ROWS, LANES), jnp.float32)
    fused_ih = p['emb'] @ p['w_ih']                              # [VOCAB, 4H] = [21, 128]
    slab = slab.at[OFF_IH:OFF_IH + VOCAB, :].set(fused_ih)
    slab = slab.at[OFF_WHH:OFF_WHH + HIDDEN, :].set(p['w_hh'])
    slab = slab.at[OFF_BL, :].set(p['b_lstm'][0])
    slab = slab.at[OFF_WG0:OFF_WG0 + RL_IN + HIDDEN, :G1].set(p['wg0'])
    slab = slab.at[OFF_BG0, :G1].set(p['bg0'][0])
    slab = slab.at[OFF_WG1:OFF_WG1 + G1, :G2].set(p['wg1'])
    slab = slab.at[OFF_BG1, :G2].set(p['bg1'][0])
    slab = slab.at[OFF_WF1:OFF_WF1 + G2, :F1].set(p['wf1'])
    slab = slab.at[OFF_BF1, :F1].set(p['bf1'][0])
    slab = slab.at[OFF_WF2:OFF_WF2 + F1, :F2].set(p['wf2'])
    slab = slab.at[OFF_BF2, :F2].set(p['bf2'][0])
    slab = slab.at[OFF_WF3:OFF_WF3 + F2, :ADICT].set(p['wf3'])
    slab = slab.at[OFF_BF3, :ADICT].set(p['bf3'][0])
    return slab


# --------------------------------- wrapper ----------------------------------------------
@jax.jit
def rn_forward(img, qst_idxs, slab):
    # time-major indices, sublane-padded: row t*BP + b = qst_idxs[b, t] (b < B), else 0
    idx_tm = (jnp.zeros((SEQ, BP), jnp.int32)
              .at[:, :B].set(jnp.transpose(qst_idxs).astype(jnp.int32))
              .reshape(SEQ * BP, 1))
    x_flat = img.reshape(B * D, K)

    vmem = pl.BlockSpec(memory_space=pltpu.MemorySpace.VMEM)
    out_pad = pl.pallas_call(
        rn_kernel,
        out_shape=jax.ShapeDtypeStruct((BP, OUT_PAD), jnp.float32),
        in_specs=[vmem, vmem, vmem],
        out_specs=vmem,
        cost_estimate=pl.CostEstimate(
            flops=8_000_000, transcendentals=30_000, bytes_accessed=400_000),
    )(idx_tm, x_flat, slab)
    return out_pad[:B, :ADICT]


# ----------------------------- pure-JAX reference ---------------------------------------
def build_pair_features(x, qst):
    # Matches torch: x_full[b, i, j] = concat(x[b, j], x[b, i]); question appended (QIP==0).
    x_i = jnp.broadcast_to(x[:, None, :, :], (B, D, D, K))          # x_i[b,i,j] = x[b,j]
    x_j = jnp.broadcast_to(x[:, :, None, :], (B, D, D, K))          # x_j[b,i,j] = x[b,i]
    q = jnp.broadcast_to(qst[:, None, None, :], (B, D, D, HIDDEN))
    feats = jnp.concatenate([x_i, x_j, q], axis=-1)                 # [B, D, D, RL_IN+HIDDEN]
    return feats.reshape(B * D * D, RL_IN + HIDDEN)


def rn_reference(img, qst_idxs, p):
    wembed = jnp.take(p['emb'], qst_idxs, axis=0)
    h = jnp.zeros((B, HIDDEN), jnp.float32)
    c = jnp.zeros((B, HIDDEN), jnp.float32)
    for t in range(SEQ):
        gates = wembed[:, t, :] @ p['w_ih'] + h @ p['w_hh'] + p['b_lstm']
        i = jax.nn.sigmoid(gates[:, :HIDDEN])
        f = jax.nn.sigmoid(gates[:, HIDDEN:2 * HIDDEN])
        g = jnp.tanh(gates[:, 2 * HIDDEN:3 * HIDDEN])
        o = jax.nn.sigmoid(gates[:, 3 * HIDDEN:])
        c = f * c + i * g
        h = o * jnp.tanh(c)
    pairs = build_pair_features(img, h)
    z = jnp.maximum(pairs @ p['wg0'] + p['bg0'], 0.0)
    z = jnp.maximum(z @ p['wg1'] + p['bg1'], 0.0)
    x_g = z.reshape(B, D * D, G2).sum(axis=1)
    f_ = jnp.maximum(x_g @ p['wf1'] + p['bf1'], 0.0)
    f_ = jnp.maximum(f_ @ p['wf2'] + p['bf2'], 0.0)
    return f_ @ p['wf3'] + p['bf3']


# ------------------------------------ main ----------------------------------------------
def init_params(key):
    ks = jax.random.split(key, 16)
    r = lambda k, shape, s=0.1: (jax.random.normal(k, shape, jnp.float32) * s)
    return {
        'emb':    r(ks[0], (VOCAB, EMBED)),
        'w_ih':   r(ks[1], (EMBED, 4 * HIDDEN)),
        'w_hh':   r(ks[2], (HIDDEN, 4 * HIDDEN)),
        'b_lstm': r(ks[3], (1, 4 * HIDDEN)),
        'wg0':    r(ks[4], (RL_IN + HIDDEN, G1)),
        'bg0':    r(ks[5], (1, G1)),
        'wg1':    r(ks[6], (G1, G2)),
        'bg1':    r(ks[7], (1, G2)),
        'wf1':    r(ks[8], (G2, F1)),
        'bf1':    r(ks[9], (1, F1)),
        'wf2':    r(ks[10], (F1, F2)),
        'bf2':    r(ks[11], (1, F2)),
        'wf3':    r(ks[12], (F2, ADICT)),
        'bf3':    r(ks[13], (1, ADICT)),
    }


if __name__ == "__main__":
    key = jax.random.PRNGKey(0)
    k_param, k_img, k_q = jax.random.split(key, 3)
    params = init_params(k_param)

    img = jax.random.normal(k_img, (B, D, K), jnp.float32)
    qst_idxs = jax.random.randint(k_q, (B, SEQ), 0, VOCAB, jnp.int32)

    slab = jax.block_until_ready(pack_params(params))   # one-time param prep (1 DMA slab)

    out = rn_forward(img, qst_idxs, slab)
    out = jax.block_until_ready(out)

    ref = rn_reference(img, qst_idxs, params)
    assert out.shape == (B, ADICT), out.shape
    assert jnp.allclose(out, ref, rtol=1e-4, atol=1e-4), (out, ref)

    print("KERNEL_OK")
</pallas_src>

<mosaic_0001>
module attributes {stable_mosaic.version = 11 : i64} {
  func.func @rn_kernel(%arg0: memref<64x1xi32, #tpu.memory_space<vmem>>, %arg1: memref<16x16xf32, #tpu.memory_space<vmem>>, %arg2: memref<680x128xf32, #tpu.memory_space<vmem>>, %arg3: memref<8x128xf32, #tpu.memory_space<vmem>>) attributes {dimension_semantics = [], scalar_prefetch = 0 : i64, scratch_operands = 0 : i64, tpu.core_type = #tpu.core_type<tc>} {
    %c0 = arith.constant 0 : index
    %c0_0 = arith.constant 0 : index
    %0 = vector.load %arg2[%c0, %c0_0] : memref<680x128xf32, #tpu.memory_space<vmem>>, vector<24x128xf32>
    %c24 = arith.constant 24 : index
    %c0_1 = arith.constant 0 : index
    %1 = vector.load %arg2[%c24, %c0_1] : memref<680x128xf32, #tpu.memory_space<vmem>>, vector<32x128xf32>
    %c56 = arith.constant 56 : index
    %c0_2 = arith.constant 0 : index
    %2 = vector.load %arg2[%c56, %c0_2] : memref<680x128xf32, #tpu.memory_space<vmem>>, vector<1x128xf32>
    %c64 = arith.constant 64 : index
    %c0_3 = arith.constant 0 : index
    %3 = vector.load %arg2[%c64, %c0_3] : memref<680x128xf32, #tpu.memory_space<vmem>>, vector<16x128xf32>
    %c80 = arith.constant 80 : index
    %c0_4 = arith.constant 0 : index
    %4 = vector.load %arg2[%c80, %c0_4] : memref<680x128xf32, #tpu.memory_space<vmem>>, vector<16x128xf32>
    %c96 = arith.constant 96 : index
    %c0_5 = arith.constant 0 : index
    %5 = vector.load %arg2[%c96, %c0_5] : memref<680x128xf32, #tpu.memory_space<vmem>>, vector<32x128xf32>
    %c128 = arith.constant 128 : index
    %c0_6 = arith.constant 0 : index
    %6 = vector.load %arg2[%c128, %c0_6] : memref<680x128xf32, #tpu.memory_space<vmem>>, vector<1x128xf32>
    %c136 = arith.constant 136 : index
    %c0_7 = arith.constant 0 : index
    %7 = vector.load %arg2[%c136, %c0_7] : memref<680x128xf32, #tpu.memory_space<vmem>>, vector<128x128xf32>
    %c264 = arith.constant 264 : index
    %c0_8 = arith.constant 0 : index
    %8 = vector.load %arg2[%c264, %c0_8] : memref<680x128xf32, #tpu.memory_space<vmem>>, vector<1x128xf32>
    %c272 = arith.constant 272 : index
    %c0_9 = arith.constant 0 : index
    %9 = vector.load %arg2[%c272, %c0_9] : memref<680x128xf32, #tpu.memory_space<vmem>>, vector<128x128xf32>
    %c400 = arith.constant 400 : index
    %c0_10 = arith.constant 0 : index
    %10 = vector.load %arg2[%c400, %c0_10] : memref<680x128xf32, #tpu.memory_space<vmem>>, vector<1x128xf32>
    %c408 = arith.constant 408 : index
    %c0_11 = arith.constant 0 : index
    %11 = vector.load %arg2[%c408, %c0_11] : memref<680x128xf32, #tpu.memory_space<vmem>>, vector<128x128xf32>
    %c536 = arith.constant 536 : index
    %c0_12 = arith.constant 0 : index
    %12 = vector.load %arg2[%c536, %c0_12] : memref<680x128xf32, #tpu.memory_space<vmem>>, vector<1x128xf32>
    %c544 = arith.constant 544 : index
    %c0_13 = arith.constant 0 : index
    %13 = vector.load %arg2[%c544, %c0_13] : memref<680x128xf32, #tpu.memory_space<vmem>>, vector<128x128xf32>
    %c672 = arith.constant 672 : index
    %c0_14 = arith.constant 0 : index
    %14 = vector.load %arg2[%c672, %c0_14] : memref<680x128xf32, #tpu.memory_space<vmem>>, vector<1x128xf32>
    %c0_15 = arith.constant 0 : index
    %c0_16 = arith.constant 0 : index
    %15 = vector.load %arg0[%c0_15, %c0_16] : memref<64x1xi32, #tpu.memory_space<vmem>>, vector<64x1xi32>
    %16 = tpu.iota {dimensions = array<i32: 1>} : vector<64x24xi32>
    %17 = vector.broadcast %15 : vector<64x1xi32> to vector<64x24xi32>
    %18 = arith.cmpi eq, %17, %16 : vector<64x24xi32>
    %19 = arith.extui %18 : vector<64x24xi1> to vector<64x24xi32>
    %20 = arith.sitofp %19 : vector<64x24xi32> to vector<64x24xf32>
    %cst = arith.constant dense<0.000000e+00> : vector<64x128xf32>
    %21 = tpu.matmul %20, %0, %cst {dimension_numbers = #tpu.dot_dimension_numbers<[1], [0], [0], [1], [0, 0, 1, 1], [], []>} : vector<64x24xf32>, vector<24x128xf32>, vector<64x128xf32> -> vector<64x128xf32>
    %22 = vector.broadcast %2 : vector<1x128xf32> to vector<64x128xf32>
    %23 = arith.addf %21, %22 : vector<64x128xf32>
    %cst_17 = arith.constant 0.000000e+00 : f32
    %24 = vector.broadcast %cst_17 : f32 to vector<8x32xf32>
    %cst_18 = arith.constant 0.000000e+00 : f32
    %25 = vector.broadcast %cst_18 : f32 to vector<8x32xf32>
    %26 = vector.extract_strided_slice %23 {offsets = [0, 0], sizes = [8, 128], strides = [1, 1]} : vector<64x128xf32> to vector<8x128xf32>
    %cst_19 = arith.constant dense<0.000000e+00> : vector<8x128xf32>
    %27 = tpu.matmul %24, %1, %cst_19 {dimension_numbers = #tpu.dot_dimension_numbers<[1], [0], [0], [1], [0, 0, 1, 1], [], []>} : vector<8x32xf32>, vector<32x128xf32>, vector<8x128xf32> -> vector<8x128xf32>
    %28 = arith.addf %26, %27 : vector<8x128xf32>
    %29 = arith.negf %28 : vector<8x128xf32>
    %30 = math.exp %29 : vector<8x128xf32>
    %cst_20 = arith.constant 1.000000e+00 : f32
    %31 = vector.broadcast %cst_20 : f32 to vector<8x128xf32>
    %32 = arith.addf %31, %30 : vector<8x128xf32>
    %33 = arith.divf %31, %32 : vector<8x128xf32>
    %34 = math.tanh %28 : vector<8x128xf32>
    %35 = vector.extract_strided_slice %33 {offsets = [0, 32], sizes = [8, 32], strides = [1, 1]} : vector<8x128xf32> to vector<8x32xf32>
    %36 = arith.mulf %35, %25 : vector<8x32xf32>
    %37 = vector.extract_strided_slice %33 {offsets = [0, 0], sizes = [8, 32], strides = [1, 1]} : vector<8x128xf32> to vector<8x32xf32>
    %38 = vector.extract_strided_slice %34 {offsets = [0, 64], sizes = [8, 32], strides = [1, 1]} : vector<8x128xf32> to vector<8x32xf32>
    %39 = arith.mulf %37, %38 : vector<8x32xf32>
    %40 = arith.addf %36, %39 : vector<8x32xf32>
    %41 = vector.extract_strided_slice %33 {offsets = [0, 96], sizes = [8, 32], strides = [1, 1]} : vector<8x128xf32> to vector<8x32xf32>
    %42 = math.tanh %40 : vector<8x32xf32>
    %43 = arith.mulf %41, %42 : vector<8x32xf32>
    %44 = vector.extract_strided_slice %23 {offsets = [8, 0], sizes = [8, 128], strides = [1, 1]} : vector<64x128xf32> to vector<8x128xf32>
    %cst_21 = arith.constant dense<0.000000e+00> : vector<8x128xf32>
    %45 = tpu.matmul %43, %1, %cst_21 {dimension_numbers = #tpu.dot_dimension_numbers<[1], [0], [0], [1], [0, 0, 1, 1], [], []>} : vector<8x32xf32>, vector<32x128xf32>, vector<8x128xf32> -> vector<8x128xf32>
    %46 = arith.addf %44, %45 : vector<8x128xf32>
    %47 = arith.negf %46 : vector<8x128xf32>
    %48 = math.exp %47 : vector<8x128xf32>
    %cst_22 = arith.constant 1.000000e+00 : f32
    %49 = vector.broadcast %cst_22 : f32 to vector<8x128xf32>
    %50 = arith.addf %49, %48 : vector<8x128xf32>
    %51 = arith.divf %49, %50 : vector<8x128xf32>
    %52 = math.tanh %46 : vector<8x128xf32>
    %53 = vector.extract_strided_slice %51 {offsets = [0, 32], sizes = [8, 32], strides = [1, 1]} : vector<8x128xf32> to vector<8x32xf32>
    %54 = arith.mulf %53, %40 : vector<8x32xf32>
    %55 = vector.extract_strided_slice %51 {offsets = [0, 0], sizes = [8, 32], strides = [1, 1]} : vector<8x128xf32> to vector<8x32xf32>
    %56 = vector.extract_strided_slice %52 {offsets = [0, 64], sizes = [8, 32], strides = [1, 1]} : vector<8x128xf32> to vector<8x32xf32>
    %57 = arith.mulf %55, %56 : vector<8x32xf32>
    %58 = arith.addf %54, %57 : vector<8x32xf32>
    %59 = vector.extract_strided_slice %51 {offsets = [0, 96], sizes = [8, 32], strides = [1, 1]} : vector<8x128xf32> to vector<8x32xf32>
    %60 = math.tanh %58 : vector<8x32xf32>
    %61 = arith.mulf %59, %60 : vector<8x32xf32>
    %62 = vector.extract_strided_slice %23 {offsets = [16, 0], sizes = [8, 128], strides = [1, 1]} : vector<64x128xf32> to vector<8x128xf32>
    %cst_23 = arith.constant dense<0.000000e+00> : vector<8x128xf32>
    %63 = tpu.matmul %61, %1, %cst_23 {dimension_numbers = #tpu.dot_dimension_numbers<[1], [0], [0], [1], [0, 0, 1, 1], [], []>} : vector<8x32xf32>, vector<32x128xf32>, vector<8x128xf32> -> vector<8x128xf32>
    %64 = arith.addf %62, %63 : vector<8x128xf32>
    %65 = arith.negf %64 : vector<8x128xf32>
    %66 = math.exp %65 : vector<8x128xf32>
    %cst_24 = arith.constant 1.000000e+00 : f32
    %67 = vector.broadcast %cst_24 : f32 to vector<8x128xf32>
    %68 = arith.addf %67, %66 : vector<8x128xf32>
    %69 = arith.divf %67, %68 : vector<8x128xf32>
    %70 = math.tanh %64 : vector<8x128xf32>
    %71 = vector.extract_strided_slice %69 {offsets = [0, 32], sizes = [8, 32], strides = [1, 1]} : vector<8x128xf32> to vector<8x32xf32>
    %72 = arith.mulf %71, %58 : vector<8x32xf32>
    %73 = vector.extract_strided_slice %69 {offsets = [0, 0], sizes = [8, 32], strides = [1, 1]} : vector<8x128xf32> to vector<8x32xf32>
    %74 = vector.extract_strided_slice %70 {offsets = [0, 64], sizes = [8, 32], strides = [1, 1]} : vector<8x128xf32> to vector<8x32xf32>
    %75 = arith.mulf %73, %74 : vector<8x32xf32>
    %76 = arith.addf %72, %75 : vector<8x32xf32>
    %77 = vector.extract_strided_slice %69 {offsets = [0, 96], sizes = [8, 32], strides = [1, 1]} : vector<8x128xf32> to vector<8x32xf32>
    %78 = math.tanh %76 : vector<8x32xf32>
    %79 = arith.mulf %77, %78 : vector<8x32xf32>
    %80 = vector.extract_strided_slice %23 {offsets = [24, 0], sizes = [8, 128], strides = [1, 1]} : vector<64x128xf32> to vector<8x128xf32>
    %cst_25 = arith.constant dense<0.000000e+00> : vector<8x128xf32>
    %81 = tpu.matmul %79, %1, %cst_25 {dimension_numbers = #tpu.dot_dimension_numbers<[1], [0], [0], [1], [0, 0, 1, 1], [], []>} : vector<8x32xf32>, vector<32x128xf32>, vector<8x128xf32> -> vector<8x128xf32>
    %82 = arith.addf %80, %81 : vector<8x128xf32>
    %83 = arith.negf %82 : vector<8x128xf32>
    %84 = math.exp %83 : vector<8x128xf32>
    %cst_26 = arith.constant 1.000000e+00 : f32
    %85 = vector.broadcast %cst_26 : f32 to vector<8x128xf32>
    %86 = arith.addf %85, %84 : vector<8x128xf32>
    %87 = arith.divf %85, %86 : vector<8x128xf32>
    %88 = math.tanh %82 : vector<8x128xf32>
    %89 = vector.extract_strided_slice %87 {offsets = [0, 32], sizes = [8, 32], strides = [1, 1]} : vector<8x128xf32> to vector<8x32xf32>
    %90 = arith.mulf %89, %76 : vector<8x32xf32>
    %91 = vector.extract_strided_slice %87 {offsets = [0, 0], sizes = [8, 32], strides = [1, 1]} : vector<8x128xf32> to vector<8x32xf32>
    %92 = vector.extract_strided_slice %88 {offsets = [0, 64], sizes = [8, 32], strides = [1, 1]} : vector<8x128xf32> to vector<8x32xf32>
    %93 = arith.mulf %91, %92 : vector<8x32xf32>
    %94 = arith.addf %90, %93 : vector<8x32xf32>
    %95 = vector.extract_strided_slice %87 {offsets = [0, 96], sizes = [8, 32], strides = [1, 1]} : vector<8x128xf32> to vector<8x32xf32>
    %96 = math.tanh %94 : vector<8x32xf32>
    %97 = arith.mulf %95, %96 : vector<8x32xf32>
    %98 = vector.extract_strided_slice %23 {offsets = [32, 0], sizes = [8, 128], strides = [1, 1]} : vector<64x128xf32> to vector<8x128xf32>
    %cst_27 = arith.constant dense<0.000000e+00> : vector<8x128xf32>
    %99 = tpu.matmul %97, %1, %cst_27 {dimension_numbers = #tpu.dot_dimension_numbers<[1], [0], [0], [1], [0, 0, 1, 1], [], []>} : vector<8x32xf32>, vector<32x128xf32>, vector<8x128xf32> -> vector<8x128xf32>
    %100 = arith.addf %98, %99 : vector<8x128xf32>
    %101 = arith.negf %100 : vector<8x128xf32>
    %102 = math.exp %101 : vector<8x128xf32>
    %cst_28 = arith.constant 1.000000e+00 : f32
    %103 = vector.broadcast %cst_28 : f32 to vector<8x128xf32>
    %104 = arith.addf %103, %102 : vector<8x128xf32>
    %105 = arith.divf %103, %104 : vector<8x128xf32>
    %106 = math.tanh %100 : vector<8x128xf32>
    %107 = vector.extract_strided_slice %105 {offsets = [0, 32], sizes = [8, 32], strides = [1, 1]} : vector<8x128xf32> to vector<8x32xf32>
    %108 = arith.mulf %107, %94 : vector<8x32xf32>
    %109 = vector.extract_strided_slice %105 {offsets = [0, 0], sizes = [8, 32], strides = [1, 1]} : vector<8x128xf32> to vector<8x32xf32>
    %110 = vector.extract_strided_slice %106 {offsets = [0, 64], sizes = [8, 32], strides = [1, 1]} : vector<8x128xf32> to vector<8x32xf32>
    %111 = arith.mulf %109, %110 : vector<8x32xf32>
    %112 = arith.addf %108, %111 : vector<8x32xf32>
    %113 = vector.extract_strided_slice %105 {offsets = [0, 96], sizes = [8, 32], strides = [1, 1]} : vector<8x128xf32> to vector<8x32xf32>
    %114 = math.tanh %112 : vector<8x32xf32>
    %115 = arith.mulf %113, %114 : vector<8x32xf32>
    %116 = vector.extract_strided_slice %23 {offsets = [40, 0], sizes = [8, 128], strides = [1, 1]} : vector<64x128xf32> to vector<8x128xf32>
    %cst_29 = arith.constant dense<0.000000e+00> : vector<8x128xf32>
    %117 = tpu.matmul %115, %1, %cst_29 {dimension_numbers = #tpu.dot_dimension_numbers<[1], [0], [0], [1], [0, 0, 1, 1], [], []>} : vector<8x32xf32>, vector<32x128xf32>, vector<8x128xf32> -> vector<8x128xf32>
    %118 = arith.addf %116, %117 : vector<8x128xf32>
    %119 = arith.negf %118 : vector<8x128xf32>
    %120 = math.exp %119 : vector<8x128xf32>
    %cst_30 = arith.constant 1.000000e+00 : f32
    %121 = vector.broadcast %cst_30 : f32 to vector<8x128xf32>
    %122 = arith.addf %121, %120 : vector<8x128xf32>
    %123 = arith.divf %121, %122 : vector<8x128xf32>
    %124 = math.tanh %118 : vector<8x128xf32>
    %125 = vector.extract_strided_slice %123 {offsets = [0, 32], sizes = [8, 32], strides = [1, 1]} : vector<8x128xf32> to vector<8x32xf32>
    %126 = arith.mulf %125, %112 : vector<8x32xf32>
    %127 = vector.extract_strided_slice %123 {offsets = [0, 0], sizes = [8, 32], strides = [1, 1]} : vector<8x128xf32> to vector<8x32xf32>
    %128 = vector.extract_strided_slice %124 {offsets = [0, 64], sizes = [8, 32], strides = [1, 1]} : vector<8x128xf32> to vector<8x32xf32>
    %129 = arith.mulf %127, %128 : vector<8x32xf32>
    %130 = arith.addf %126, %129 : vector<8x32xf32>
    %131 = vector.extract_strided_slice %123 {offsets = [0, 96], sizes = [8, 32], strides = [1, 1]} : vector<8x128xf32> to vector<8x32xf32>
    %132 = math.tanh %130 : vector<8x32xf32>
    %133 = arith.mulf %131, %132 : vector<8x32xf32>
    %134 = vector.extract_strided_slice %23 {offsets = [48, 0], sizes = [8, 128], strides = [1, 1]} : vector<64x128xf32> to vector<8x128xf32>
    %cst_31 = arith.constant dense<0.000000e+00> : vector<8x128xf32>
    %135 = tpu.matmul %133, %1, %cst_31 {dimension_numbers = #tpu.dot_dimension_numbers<[1], [0], [0], [1], [0, 0, 1, 1], [], []>} : vector<8x32xf32>, vector<32x128xf32>, vector<8x128xf32> -> vector<8x128xf32>
    %136 = arith.addf %134, %135 : vector<8x128xf32>
    %137 = arith.negf %136 : vector<8x128xf32>
    %138 = math.exp %137 : vector<8x128xf32>
    %cst_32 = arith.constant 1.000000e+00 : f32
    %139 = vector.broadcast %cst_32 : f32 to vector<8x128xf32>
    %140 = arith.addf %139, %138 : vector<8x128xf32>
    %141 = arith.divf %139, %140 : vector<8x128xf32>
    %142 = math.tanh %136 : vector<8x128xf32>
    %143 = vector.extract_strided_slice %141 {offsets = [0, 32], sizes = [8, 32], strides = [1, 1]} : vector<8x128xf32> to vector<8x32xf32>
    %144 = arith.mulf %143, %130 : vector<8x32xf32>
    %145 = vector.extract_strided_slice %141 {offsets = [0, 0], sizes = [8, 32], strides = [1, 1]} : vector<8x128xf32> to vector<8x32xf32>
    %146 = vector.extract_strided_slice %142 {offsets = [0, 64], sizes = [8, 32], strides = [1, 1]} : vector<8x128xf32> to vector<8x32xf32>
    %147 = arith.mulf %145, %146 : vector<8x32xf32>
    %148 = arith.addf %144, %147 : vector<8x32xf32>
    %149 = vector.extract_strided_slice %141 {offsets = [0, 96], sizes = [8, 32], strides = [1, 1]} : vector<8x128xf32> to vector<8x32xf32>
    %150 = math.tanh %148 : vector<8x32xf32>
    %151 = arith.mulf %149, %150 : vector<8x32xf32>
    %152 = vector.extract_strided_slice %23 {offsets = [56, 0], sizes = [8, 128], strides = [1, 1]} : vector<64x128xf32> to vector<8x128xf32>
    %cst_33 = arith.constant dense<0.000000e+00> : vector<8x128xf32>
    %153 = tpu.matmul %151, %1, %cst_33 {dimension_numbers = #tpu.dot_dimension_numbers<[1], [0], [0], [1], [0, 0, 1, 1], [], []>} : vector<8x32xf32>, vector<32x128xf32>, vector<8x128xf32> -> vector<8x128xf32>
    %154 = arith.addf %152, %153 : vector<8x128xf32>
    %155 = arith.negf %154 : vector<8x128xf32>
    %156 = math.exp %155 : vector<8x128xf32>
    %cst_34 = arith.constant 1.000000e+00 : f32
    %157 = vector.broadcast %cst_34 : f32 to vector<8x128xf32>
    %158 = arith.addf %157, %156 : vector<8x128xf32>
    %159 = arith.divf %157, %158 : vector<8x128xf32>
    %160 = math.tanh %154 : vector<8x128xf32>
    %161 = vector.extract_strided_slice %159 {offsets = [0, 32], sizes = [8, 32], strides = [1, 1]} : vector<8x128xf32> to vector<8x32xf32>
    %162 = arith.mulf %161, %148 : vector<8x32xf32>
    %163 = vector.extract_strided_slice %159 {offsets = [0, 0], sizes = [8, 32], strides = [1, 1]} : vector<8x128xf32> to vector<8x32xf32>
    %164 = vector.extract_strided_slice %160 {offsets = [0, 64], sizes = [8, 32], strides = [1, 1]} : vector<8x128xf32> to vector<8x32xf32>
    %165 = arith.mulf %163, %164 : vector<8x32xf32>
    %166 = arith.addf %162, %165 : vector<8x32xf32>
    %167 = vector.extract_strided_slice %159 {offsets = [0, 96], sizes = [8, 32], strides = [1, 1]} : vector<8x128xf32> to vector<8x32xf32>
    %168 = math.tanh %166 : vector<8x32xf32>
    %169 = arith.mulf %167, %168 : vector<8x32xf32>
    %c0_35 = arith.constant 0 : index
    %c0_36 = arith.constant 0 : index
    %170 = vector.load %arg1[%c0_35, %c0_36] : memref<16x16xf32, #tpu.memory_space<vmem>>, vector<16x16xf32>
    %cst_37 = arith.constant dense<0.000000e+00> : vector<16x128xf32>
    %171 = tpu.matmul %170, %3, %cst_37 {dimension_numbers = #tpu.dot_dimension_numbers<[1], [0], [0], [1], [0, 0, 1, 1], [], []>} : vector<16x16xf32>, vector<16x128xf32>, vector<16x128xf32> -> vector<16x128xf32>
    %cst_38 = arith.constant dense<0.000000e+00> : vector<16x128xf32>
    %172 = tpu.matmul %170, %4, %cst_38 {dimension_numbers = #tpu.dot_dimension_numbers<[1], [0], [0], [1], [0, 0, 1, 1], [], []>} : vector<16x16xf32>, vector<16x128xf32>, vector<16x128xf32> -> vector<16x128xf32>
    %cst_39 = arith.constant dense<0.000000e+00> : vector<8x128xf32>
    %173 = tpu.matmul %169, %5, %cst_39 {dimension_numbers = #tpu.dot_dimension_numbers<[1], [0], [0], [1], [0, 0, 1, 1], [], []>} : vector<8x32xf32>, vector<32x128xf32>, vector<8x128xf32> -> vector<8x128xf32>
    %174 = vector.broadcast %6 : vector<1x128xf32> to vector<8x128xf32>
    %175 = arith.addf %173, %174 : vector<8x128xf32>
    %176 = tpu.iota {dimensions = array<i32: 0>} : vector<128x16xi32>
    %177 = tpu.iota {dimensions = array<i32: 1>} : vector<128x16xi32>
    %c6_i32 = arith.constant 6 : i32
    %178 = vector.broadcast %c6_i32 : i32 to vector<128x16xi32>
    %179 = arith.shrsi %176, %178 : vector<128x16xi32>
    %c3_i32 = arith.constant 3 : i32
    %180 = vector.broadcast %c3_i32 : i32 to vector<128x16xi32>
    %181 = arith.shrsi %176, %180 : vector<128x16xi32>
    %c7_i32 = arith.constant 7 : i32
    %182 = vector.broadcast %c7_i32 : i32 to vector<128x16xi32>
    %183 = arith.andi %181, %182 : vector<128x16xi32>
    %c7_i32_40 = arith.constant 7 : i32
    %184 = vector.broadcast %c7_i32_40 : i32 to vector<128x16xi32>
    %185 = arith.andi %176, %184 : vector<128x16xi32>
    %c8_i32 = arith.constant 8 : i32
    %186 = vector.broadcast %c8_i32 : i32 to vector<128x16xi32>
    %187 = arith.muli %179, %186 : vector<128x16xi32>
    %188 = arith.addi %187, %185 : vector<128x16xi32>
    %189 = arith.cmpi eq, %177, %188 : vector<128x16xi32>
    %190 = arith.extui %189 : vector<128x16xi1> to vector<128x16xi32>
    %191 = arith.sitofp %190 : vector<128x16xi32> to vector<128x16xf32>
    %c8_i32_41 = arith.constant 8 : i32
    %192 = vector.broadcast %c8_i32_41 : i32 to vector<128x16xi32>
    %193 = arith.muli %179, %192 : vector<128x16xi32>
    %194 = arith.addi %193, %183 : vector<128x16xi32>
    %195 = arith.cmpi eq, %177, %194 : vector<128x16xi32>
    %196 = arith.extui %195 : vector<128x16xi1> to vector<128x16xi32>
    %197 = arith.sitofp %196 : vector<128x16xi32> to vector<128x16xf32>
    %198 = tpu.iota {dimensions = array<i32: 0>} : vector<128x8xi32>
    %199 = tpu.iota {dimensions = array<i32: 1>} : vector<128x8xi32>
    %c6_i32_42 = arith.constant 6 : i32
    %200 = vector.broadcast %c6_i32_42 : i32 to vector<128x8xi32>
    %201 = arith.shrsi %198, %200 : vector<128x8xi32>
    %202 = arith.cmpi eq, %199, %201 : vector<128x8xi32>
    %203 = arith.extui %202 : vector<128x8xi1> to vector<128x8xi32>
    %204 = arith.sitofp %203 : vector<128x8xi32> to vector<128x8xf32>
    %cst_43 = arith.constant dense<0.000000e+00> : vector<128x128xf32>
    %205 = tpu.matmul %191, %171, %cst_43 {dimension_numbers = #tpu.dot_dimension_numbers<[1], [0], [0], [1], [0, 0, 1, 1], [], []>} : vector<128x16xf32>, vector<16x128xf32>, vector<128x128xf32> -> vector<128x128xf32>
    %cst_44 = arith.constant dense<0.000000e+00> : vector<128x128xf32>
    %206 = tpu.matmul %197, %172, %cst_44 {dimension_numbers = #tpu.dot_dimension_numbers<[1], [0], [0], [1], [0, 0, 1, 1], [], []>} : vector<128x16xf32>, vector<16x128xf32>, vector<128x128xf32> -> vector<128x128xf32>
    %207 = arith.addf %205, %206 : vector<128x128xf32>
    %cst_45 = arith.constant dense<0.000000e+00> : vector<128x128xf32>
    %208 = tpu.matmul %204, %175, %cst_45 {dimension_numbers = #tpu.dot_dimension_numbers<[1], [0], [0], [1], [0, 0, 1, 1], [], []>} : vector<128x8xf32>, vector<8x128xf32>, vector<128x128xf32> -> vector<128x128xf32>
    %209 = arith.addf %207, %208 : vector<128x128xf32>
    %cst_46 = arith.constant 0.000000e+00 : f32
    %210 = vector.broadcast %cst_46 : f32 to vector<128x128xf32>
    %211 = arith.maximumf %209, %210 : vector<128x128xf32>
    %cst_47 = arith.constant dense<0.000000e+00> : vector<128x128xf32>
    %212 = tpu.matmul %211, %7, %cst_47 {dimension_numbers = #tpu.dot_dimension_numbers<[1], [0], [0], [1], [0, 0, 1, 1], [], []>} : vector<128x128xf32>, vector<128x128xf32>, vector<128x128xf32> -> vector<128x128xf32>
    %213 = vector.broadcast %8 : vector<1x128xf32> to vector<128x128xf32>
    %214 = arith.addf %212, %213 : vector<128x128xf32>
    %cst_48 = arith.constant 0.000000e+00 : f32
    %215 = vector.broadcast %cst_48 : f32 to vector<128x128xf32>
    %216 = arith.maximumf %214, %215 : vector<128x128xf32>
    %217 = tpu.iota {dimensions = array<i32: 0>} : vector<8x128xi32>
    %218 = tpu.iota {dimensions = array<i32: 1>} : vector<8x128xi32>
    %c6_i32_49 = arith.constant 6 : i32
    %219 = vector.broadcast %c6_i32_49 : i32 to vector<8x128xi32>
    %220 = arith.shrsi %218, %219 : vector<8x128xi32>
    %221 = arith.cmpi eq, %217, %220 : vector<8x128xi32>
    %222 = arith.extui %221 : vector<8x128xi1> to vector<8x128xi32>
    %223 = arith.sitofp %222 : vector<8x128xi32> to vector<8x128xf32>
    %cst_50 = arith.constant dense<0.000000e+00> : vector<8x128xf32>
    %224 = tpu.matmul %223, %216, %cst_50 {dimension_numbers = #tpu.dot_dimension_numbers<[1], [0], [0], [1], [0, 0, 1, 1], [], []>} : vector<8x128xf32>, vector<128x128xf32>, vector<8x128xf32> -> vector<8x128xf32>
    %cst_51 = arith.constant dense<0.000000e+00> : vector<8x128xf32>
    %225 = tpu.matmul %224, %9, %cst_51 {dimension_numbers = #tpu.dot_dimension_numbers<[1], [0], [0], [1], [0, 0, 1, 1], [], []>} : vector<8x128xf32>, vector<128x128xf32>, vector<8x128xf32> -> vector<8x128xf32>
    %226 = vector.broadcast %10 : vector<1x128xf32> to vector<8x128xf32>
    %227 = arith.addf %225, %226 : vector<8x128xf32>
    %cst_52 = arith.constant 0.000000e+00 : f32
    %228 = vector.broadcast %cst_52 : f32 to vector<8x128xf32>
    %229 = arith.maximumf %227, %228 : vector<8x128xf32>
    %cst_53 = arith.constant dense<0.000000e+00> : vector<8x128xf32>
    %230 = tpu.matmul %229, %11, %cst_53 {dimension_numbers = #tpu.dot_dimension_numbers<[1], [0], [0], [1], [0, 0, 1, 1], [], []>} : vector<8x128xf32>, vector<128x128xf32>, vector<8x128xf32> -> vector<8x128xf32>
    %231 = vector.broadcast %12 : vector<1x128xf32> to vector<8x128xf32>
    %232 = arith.addf %230, %231 : vector<8x128xf32>
    %cst_54 = arith.constant 0.000000e+00 : f32
    %233 = vector.broadcast %cst_54 : f32 to vector<8x128xf32>
    %234 = arith.maximumf %232, %233 : vector<8x128xf32>
    %cst_55 = arith.constant dense<0.000000e+00> : vector<8x128xf32>
    %235 = tpu.matmul %234, %13, %cst_55 {dimension_numbers = #tpu.dot_dimension_numbers<[1], [0], [0], [1], [0, 0, 1, 1], [], []>} : vector<8x128xf32>, vector<128x128xf32>, vector<8x128xf32> -> vector<8x128xf32>
    %236 = vector.broadcast %14 : vector<1x128xf32> to vector<8x128xf32>
    %237 = arith.addf %235, %236 : vector<8x128xf32>
    %c0_56 = arith.constant 0 : index
    %c0_57 = arith.constant 0 : index
    %238 = vector.load %arg3[%c0_56, %c0_57] : memref<8x128xf32, #tpu.memory_space<vmem>>, vector<8x128xf32>
    tpu.vector_store %arg3[%c0_56, %c0_57], %237 {strides = array<i32>} : memref<8x128xf32, #tpu.memory_space<vmem>>, vector<8x128xf32>,
    return
  }
}

</mosaic_0001>

<llo_original>
// kernel: rn_forward.1
$region0: #{rn_forward.1}
  #allocation0 [shape = 'u32[]', space=smem, size = 0x4, offset = 0x4, fixed_abs, tag = 'smem constant byte address 0x4 - core index']
  #allocation1 [shape = 'u32[144,128]{1,0:T(1,128)}', space=vmem, size = 0x12000, scoped, tag = 'internal scratch']
  %s0 = inlined_call_operand.vmem [shape: s32[64,1], index: 0, kind: input, shape index: {}]
  %s1 = inlined_call_operand.vmem [shape: f32[16,16], index: 1, kind: input, shape index: {}]
  %s2 = inlined_call_operand.hbm [shape: f32[680,128], index: 2, kind: input, shape index: {}]
  %s3 = inlined_call_operand.vmem [shape: f32[8,128], index: 3, kind: output, shape index: {}]
  %s4 = sld [smem:[#allocation0]]
  $region26: #{rn_forward.1} parent=0
    _
  %s6 = ssub.s32 1, %s4
  %s7 = scalar_select 0, %s6, %s4
  $region1: #{rn_forward.1} parent=0
    #allocation2 [shape = 'u8[348160]{0}', space=vmem, size = 0x55000, scoped, tag = 'input window, operand 2, single buffered']
    #allocation3 [shape = 's32[1]{0}', space=sflag, size = 0x4, scoped, tag = 'scoped memory for rn_forward.1']
    %8 = vsyncpa [#allocation3], 0
    // Predicated region
    $region2: #{rn_forward.1} parent=1 // pred_check
      _
    $region3: #{rn_forward.1} parent=1 // pred_check_branch
      %10 = sbr.rel (0) target = $region5
    $region4: #{rn_forward.1} parent=1 // pred_region
      _
    $region5: #{rn_forward.1} parent=1 // pred_fallthru
      _
    // Predicated region
    $region6: #{rn_forward.1} parent=1 // pred_check
      _
    $region7: #{rn_forward.1} parent=1 // pred_check_branch
      %12 = sbr.rel (0) target = $region9
    $region8: #{rn_forward.1} parent=1 // pred_region
      _
    $region9: #{rn_forward.1} parent=1 // pred_fallthru
      _
    // Predicated region
    $region10: #{rn_forward.1} parent=1 // pred_check
      _
    $region11: #{rn_forward.1} parent=1 // pred_check_branch
      %14 = sbr.rel (0) target = $region13
    $region12: #{rn_forward.1} parent=1 // pred_region
      %s16 = ssub.s32 10880, 10880
      %17 = vsyncadd [#allocation3], %s16
      %s18 = sshll.u32 [#allocation2], 4
      %s19 = int_to_ptr.vmem [resolvable:$true] %s18
      %24 = dma.hbm_to_vmem [thread:$0]  %s2, 10880, %s19, [#allocation3], 128, 128, 8
    $region13: #{rn_forward.1} parent=1 // pred_fallthru
      _
    // Predicated region
    $region14: #{rn_forward.1} parent=1 // pred_check
      _
    $region15: #{rn_forward.1} parent=1 // pred_check_branch
      %26 = sbr.rel (0) target = $region17
    $region16: #{rn_forward.1} parent=1 // pred_region
      %27 = dma.done [#allocation3], 10880
    $region17: #{rn_forward.1} parent=1 // pred_fallthru
      _
    %v28 = vld [vmem:[#allocation2] sm:$0xff]
    %v29 = vld [vmem:[#allocation2 + $0x8] sm:$0xff]
    %v30 = vld [vmem:[#allocation2 + $0x10] sm:$0xff]
    %v31 = vld [vmem:[#allocation2 + $0x18] sm:$0xff]
    %v32 = vld [vmem:[#allocation2 + $0x20] sm:$0xff]
    %v33 = vld [vmem:[#allocation2 + $0x28] sm:$0xff]
    %v34 = vld [vmem:[#allocation2 + $0x30] sm:$0xff]
    %v35 = vld [vmem:[#allocation2 + $0x38] sm:$0x1]
    %v36 = vld [vmem:[#allocation2 + $0x40] sm:$0xff]
    %v37 = vld [vmem:[#allocation2 + $0x48] sm:$0xff]
    %v38 = vld [vmem:[#allocation2 + $0x50] sm:$0xff]
    %v39 = vld [vmem:[#allocation2 + $0x58] sm:$0xff]
    %v40 = vld [vmem:[#allocation2 + $0x60] sm:$0xff]
    %v41 = vld [vmem:[#allocation2 + $0x68] sm:$0xff]
    %v42 = vld [vmem:[#allocation2 + $0x70] sm:$0xff]
    %v43 = vld [vmem:[#allocation2 + $0x78] sm:$0xff]
    %v44 = vld [vmem:[#allocation2 + $0x80] sm:$0x1]
    %v45 = vld [vmem:[#allocation2 + $0x88] sm:$0xff]
    %v46 = vld [vmem:[#allocation2 + $0x90] sm:$0xff]
    %v47 = vld [vmem:[#allocation2 + $0x98] sm:$0xff]
    %v48 = vld [vmem:[#allocation2 + $0xa0] sm:$0xff]
    %v49 = vld [vmem:[#allocation2 + $0xa8] sm:$0xff]
    %v50 = vld [vmem:[#allocation2 + $0xb0] sm:$0xff]
    %v51 = vld [vmem:[#allocation2 + $0xb8] sm:$0xff]
    %v52 = vld [vmem:[#allocation2 + $0xc0] sm:$0xff]
    %v53 = vld [vmem:[#allocation2 + $0xc8] sm:$0xff]
    %v54 = vld [vmem:[#allocation2 + $0xd0] sm:$0xff]
    %v55 = vld [vmem:[#allocation2 + $0xd8] sm:$0xff]
    %v56 = vld [vmem:[#allocation2 + $0xe0] sm:$0xff]
    %v57 = vld [vmem:[#allocation2 + $0xe8] sm:$0xff]
    %v58 = vld [vmem:[#allocation2 + $0xf0] sm:$0xff]
    %v59 = vld [vmem:[#allocation2 + $0xf8] sm:$0xff]
    %v60 = vld [vmem:[#allocation2 + $0x100] sm:$0xff]
    %v61 = vld [vmem:[#allocation2 + $0x108] sm:$0x1]
    %v62 = vld [vmem:[#allocation2 + $0x110] sm:$0xff]
    %v63 = vld [vmem:[#allocation2 + $0x118] sm:$0xff]
    %v64 = vld [vmem:[#allocation2 + $0x120] sm:$0xff]
    %v65 = vld [vmem:[#allocation2 + $0x128] sm:$0xff]
    %v66 = vld [vmem:[#allocation2 + $0x130] sm:$0xff]
    %v67 = vld [vmem:[#allocation2 + $0x138] sm:$0xff]
    %v68 = vld [vmem:[#allocation2 + $0x140] sm:$0xff]
    %v69 = vld [vmem:[#allocation2 + $0x148] sm:$0xff]
    %v70 = vld [vmem:[#allocation2 + $0x150] sm:$0xff]
    %v71 = vld [vmem:[#allocation2 + $0x158] sm:$0xff]
    %v72 = vld [vmem:[#allocation2 + $0x160] sm:$0xff]
    %v73 = vld [vmem:[#allocation2 + $0x168] sm:$0xff]
    %v74 = vld [vmem:[#allocation2 + $0x170] sm:$0xff]
    %v75 = vld [vmem:[#allocation2 + $0x178] sm:$0xff]
    %v76 = vld [vmem:[#allocation2 + $0x180] sm:$0xff]
    %v77 = vld [vmem:[#allocation2 + $0x188] sm:$0xff]
    %v78 = vld [vmem:[#allocation2 + $0x190] sm:$0x1]
    %v79 = vld [vmem:[#allocation2 + $0x198] sm:$0xff]
    %v80 = vld [vmem:[#allocation2 + $0x1a0] sm:$0xff]
    %v81 = vld [vmem:[#allocation2 + $0x1a8] sm:$0xff]
    %v82 = vld [vmem:[#allocation2 + $0x1b0] sm:$0xff]
    %v83 = vld [vmem:[#allocation2 + $0x1b8] sm:$0xff]
    %v84 = vld [vmem:[#allocation2 + $0x1c0] sm:$0xff]
    %v85 = vld [vmem:[#allocation2 + $0x1c8] sm:$0xff]
    %v86 = vld [vmem:[#allocation2 + $0x1d0] sm:$0xff]
    %v87 = vld [vmem:[#allocation2 + $0x1d8] sm:$0xff]
    %v88 = vld [vmem:[#allocation2 + $0x1e0] sm:$0xff]
    %v89 = vld [vmem:[#allocation2 + $0x1e8] sm:$0xff]
    %v90 = vld [vmem:[#allocation2 + $0x1f0] sm:$0xff]
    %v91 = vld [vmem:[#allocation2 + $0x1f8] sm:$0xff]
    %v92 = vld [vmem:[#allocation2 + $0x200] sm:$0xff]
    %v93 = vld [vmem:[#allocation2 + $0x208] sm:$0xff]
    %v94 = vld [vmem:[#allocation2 + $0x210] sm:$0xff]
    %v95 = vld [vmem:[#allocation2 + $0x218] sm:$0x1]
    %v96 = vld [vmem:[#allocation2 + $0x220] sm:$0xff]
    %v97 = vld [vmem:[#allocation2 + $0x228] sm:$0xff]
    %v98 = vld [vmem:[#allocation2 + $0x230] sm:$0xff]
    %v99 = vld [vmem:[#allocation2 + $0x238] sm:$0xff]
    %v100 = vld [vmem:[#allocation2 + $0x240] sm:$0xff]
    %v101 = vld [vmem:[#allocation2 + $0x248] sm:$0xff]
    %v102 = vld [vmem:[#allocation2 + $0x250] sm:$0xff]
    %v103 = vld [vmem:[#allocation2 + $0x258] sm:$0xff]
    %v104 = vld [vmem:[#allocation2 + $0x260] sm:$0xff]
    %v105 = vld [vmem:[#allocation2 + $0x268] sm:$0xff]
    %v106 = vld [vmem:[#allocation2 + $0x270] sm:$0xff]
    %v107 = vld [vmem:[#allocation2 + $0x278] sm:$0xff]
    %v108 = vld [vmem:[#allocation2 + $0x280] sm:$0xff]
    %v109 = vld [vmem:[#allocation2 + $0x288] sm:$0xff]
    %v110 = vld [vmem:[#allocation2 + $0x290] sm:$0xff]
    %v111 = vld [vmem:[#allocation2 + $0x298] sm:$0xff]
    %v112 = vld [vmem:[#allocation2 + $0x2a0] sm:$0x1]
    %v113 = vld [vmem:[%s0] sm:$0xff]
    %v114 = vld [vmem:[%s0 + $0x8] sm:$0xff]
    %v115 = vld [vmem:[%s0 + $0x10] sm:$0xff]
    %v116 = vld [vmem:[%s0 + $0x18] sm:$0xff]
    %v117 = vld [vmem:[%s0 + $0x20] sm:$0xff]
    %v118 = vld [vmem:[%s0 + $0x28] sm:$0xff]
    %v119 = vld [vmem:[%s0 + $0x30] sm:$0xff]
    %v120 = vld [vmem:[%s0 + $0x38] sm:$0xff]
    %v121 = vlaneseq
    %v122 = vand.u32 %v121, 127
    %123 = vset.pattern.permute.xlu0 0
    %124 = vperm.xlu0 %123, %v113
    %v125 = vpop.permute.xlu0 %124
    %126 = vset.pattern.permute.xlu0 0
    %127 = vperm.xlu0 %126, %v114
    %v128 = vpop.permute.xlu0 %127
    %129 = vset.pattern.permute.xlu0 0
    %130 = vperm.xlu0 %129, %v115
    %v131 = vpop.permute.xlu0 %130
    %132 = vset.pattern.permute.xlu0 0
    %133 = vperm.xlu0 %132, %v116
    %v134 = vpop.permute.xlu0 %133
    %135 = vset.pattern.permute.xlu0 0
    %136 = vperm.xlu0 %135, %v117
    %v137 = vpop.permute.xlu0 %136
    %138 = vset.pattern.permute.xlu0 0
    %139 = vperm.xlu0 %138, %v118
    %v140 = vpop.permute.xlu0 %139
    %141 = vset.pattern.permute.xlu0 0
    %142 = vperm.xlu0 %141, %v119
    %v143 = vpop.permute.xlu0 %142
    %144 = vset.pattern.permute.xlu0 0
    %145 = vperm.xlu0 %144, %v120
    %v146 = vpop.permute.xlu0 %145
    %vm147 = vcmp.eq.s32.totalorder %v125, %v122
    %vm148 = vcmp.eq.s32.totalorder %v128, %v122
    %vm149 = vcmp.eq.s32.totalorder %v131, %v122
    %vm150 = vcmp.eq.s32.totalorder %v134, %v122
    %vm151 = vcmp.eq.s32.totalorder %v137, %v122
    %vm152 = vcmp.eq.s32.totalorder %v140, %v122
    %vm153 = vcmp.eq.s32.totalorder %v143, %v122
    %vm154 = vcmp.eq.s32.totalorder %v146, %v122
    %v155 = vsel %vm147, 1, 0
    %v156 = vsel %vm148, 1, 0
    %v157 = vsel %vm149, 1, 0
    %v158 = vsel %vm150, 1, 0
    %v159 = vsel %vm151, 1, 0
    %v160 = vsel %vm152, 1, 0
    %v161 = vsel %vm153, 1, 0
    %v162 = vsel %vm154, 1, 0
    %v163 = vcvt.s32.f32 %v155
    %v164 = vcvt.s32.f32 %v156
    %v165 = vcvt.s32.f32 %v157
    %v166 = vcvt.s32.f32 %v158
    %v167 = vcvt.s32.f32 %v159
    %v168 = vcvt.s32.f32 %v160
    %v169 = vcvt.s32.f32 %v161
    %v170 = vcvt.s32.f32 %v162
    %v171 = vlaneseq
    %v172 = vshrl.u32 %v171, 7
    %v173 = vsub.s32 0, %v172
    %v174 = vrot.slane %v35, %v173
    %vm175 = vcmask 195584
    %v177 = vsel %vm175, %v163, 0
    %v180 = vsel %vm175, %v164, 0
    %v183 = vsel %vm175, %v165, 0
    %v186 = vsel %vm175, %v166, 0
    %v189 = vsel %vm175, %v167, 0
    %v192 = vsel %vm175, %v168, 0
    %v195 = vsel %vm175, %v169, 0
    %v198 = vsel %vm175, %v170, 0
    %200 = vmatprep.subr.mxu0 0.0
    %201 = vmatpush1.msra.mxu0 %v28
    %202 = vmatprep.subr.mxu0 0.0
    %203 = vmatpush1.msra.mxu0 %v29
    %204 = vmatprep.subr.mxu0 0.0
    %205 = vmatpush1.msra.mxu0 %v30
    %206 = vmatprep.subr.mxu0 0.0
    %207 = vmatpush1.msra.mxu0 0.0
    %208 = vmatprep.subr.mxu0 0.0
    %209 = vmatpush1.msra.mxu0 0.0
    %210 = vmatprep.subr.mxu0 0.0
    %211 = vmatpush1.msra.mxu0 0.0
    %212 = vmatprep.subr.mxu0 0.0
    %213 = vmatpush1.msra.mxu0 0.0
    %214 = vmatprep.subr.mxu0 0.0
    %215 = vmatpush1.msra.mxu0 0.0
    %216 = vmatprep.subr.mxu0 0.0
    %217 = vmatpush1.msra.mxu0 0.0
    %218 = vmatprep.subr.mxu0 0.0
    %219 = vmatpush1.msra.mxu0 0.0
    %220 = vmatprep.subr.mxu0 0.0
    %221 = vmatpush1.msra.mxu0 0.0
    %222 = vmatprep.subr.mxu0 0.0
    %223 = vmatpush1.msra.mxu0 0.0
    %224 = vmatprep.subr.mxu0 0.0
    %225 = vmatpush1.msra.mxu0 0.0
    %226 = vmatprep.subr.mxu0 0.0
    %227 = vmatpush1.msra.mxu0 0.0
    %228 = vmatprep.subr.mxu0 0.0
    %229 = vmatpush1.msra.mxu0 0.0
    %230 = vmatprep.subr.mxu0 0.0
    %231 = vmatpush1.msra.mxu0 0.0
    %232 = vmatprep.subr.mxu0 0.0
    %233 = vmatpush1.msra.mxu0 0.0
    %234 = vmatprep.subr.mxu0 0.0
    %235 = vmatpush1.msra.mxu0 0.0
    %236 = vmatprep.subr.mxu0 0.0
    %237 = vmatpush1.msra.mxu0 0.0
    %238 = vmatprep.subr.mxu0 0.0
    %239 = vmatpush1.msra.mxu0 0.0
    %240 = vmatprep.subr.mxu0 0.0
    %241 = vmatpush1.msra.mxu0 0.0
    %242 = vmatprep.subr.mxu0 0.0
    %243 = vmatpush1.msra.mxu0 0.0
    %244 = vmatprep.subr.mxu0 0.0
    %245 = vmatpush1.msra.mxu0 0.0
    %246 = vmatprep.subr.mxu0 0.0
    %247 = vmatpush1.msra.mxu0 0.0
    %248 = vmatprep.subr.mxu0 0.0
    %249 = vmatpush1.msra.mxu0 0.0
    %250 = vmatprep.subr.mxu0 0.0
    %251 = vmatpush1.msra.mxu0 0.0
    %252 = vmatprep.subr.mxu0 0.0
    %253 = vmatpush1.msra.mxu0 0.0
    %254 = vmatprep.subr.mxu0 0.0
    %255 = vmatpush1.msra.mxu0 0.0
    %256 = vmatprep.subr.mxu0 0.0
    %257 = vmatpush1.msra.mxu0 0.0
    %258 = vmatprep.subr.mxu0 0.0
    %259 = vmatpush1.msra.mxu0 0.0
    %260 = vmatprep.subr.mxu0 0.0
    %261 = vmatpush1.msra.mxu0 0.0
    %262 = vmatprep.subr.mxu0 0.0
    %263 = vmatpush1.msra.mxu0 0.0
    %264 = vmatprep.mubr.f32.mxu0 0.0
    %265 = vmatmul.mubr.f32.gmra.mrb[0].mxu0 %v177
    %v266 = vpop.f32.mrb[0].mxu0
    %v267 = vadd.f32 %v174, %v266
    %v268 = vpop.f32.mrb[0].mxu0
    %269 = vmatprep.mubr.f32.mxu0 0.0
    %270 = vmatmul.mubr.f32.gmra.mrb[0].mxu0 %v180
    %v271 = vpop.f32.mrb[0].mxu0
    %v272 = vadd.f32 %v174, %v271
    %v273 = vpop.f32.mrb[0].mxu0
    %274 = vmatprep.mubr.f32.mxu0 0.0
    %275 = vmatmul.mubr.f32.gmra.mrb[0].mxu0 %v183
    %v276 = vpop.f32.mrb[0].mxu0
    %v277 = vadd.f32 %v174, %v276
    %v278 = vpop.f32.mrb[0].mxu0
    %279 = vmatprep.mubr.f32.mxu0 0.0
    %280 = vmatmul.mubr.f32.gmra.mrb[0].mxu0 %v186
    %v281 = vpop.f32.mrb[0].mxu0
    %v282 = vadd.f32 %v174, %v281
    %v283 = vpop.f32.mrb[0].mxu0
    %284 = vmatprep.mubr.f32.mxu0 0.0
    %285 = vmatmul.mubr.f32.gmra.mrb[0].mxu0 %v189
    %v286 = vpop.f32.mrb[0].mxu0
    %v287 = vadd.f32 %v174, %v286
    %v288 = vpop.f32.mrb[0].mxu0
    %289 = vmatprep.mubr.f32.mxu0 0.0
    %290 = vmatmul.mubr.f32.gmra.mrb[0].mxu0 %v192
    %v291 = vpop.f32.mrb[0].mxu0
    %v292 = vadd.f32 %v174, %v291
    %v293 = vpop.f32.mrb[0].mxu0
    %294 = vmatprep.mubr.f32.mxu0 0.0
    %295 = vmatmul.mubr.f32.gmra.mrb[0].mxu0 %v195
    %v296 = vpop.f32.mrb[0].mxu0
    %v297 = vadd.f32 %v174, %v296
    %v298 = vpop.f32.mrb[0].mxu0
    %299 = vmatprep.mubr.f32.mxu0 0.0
    %300 = vmatmul.mubr.f32.gmra.mrb[0].mxu0 %v198
    %v301 = vpop.f32.mrb[0].mxu0
    %v302 = vadd.f32 %v174, %v301
    %v303 = vpop.f32.mrb[0].mxu0
    %304 = vdwg.mxu0
    %vm305 = vcmask 261120
    %v307 = vsel %vm305, 0.0, 0
    %309 = vmatprep.subr.mxu0 0.0
    %310 = vmatpush1.msra.mxu0 %v31
    %311 = vmatprep.subr.mxu0 0.0
    %312 = vmatpush1.msra.mxu0 %v32
    %313 = vmatprep.subr.mxu0 0.0
    %314 = vmatpush1.msra.mxu0 %v33
    %315 = vmatprep.subr.mxu0 0.0
    %316 = vmatpush1.msra.mxu0 %v34
    %317 = vmatprep.subr.mxu0 0.0
    %318 = vmatpush1.msra.mxu0 0.0
    %319 = vmatprep.subr.mxu0 0.0
    %320 = vmatpush1.msra.mxu0 0.0
    %321 = vmatprep.subr.mxu0 0.0
    %322 = vmatpush1.msra.mxu0 0.0
    %323 = vmatprep.subr.mxu0 0.0
    %324 = vmatpush1.msra.mxu0 0.0
    %325 = vmatprep.subr.mxu0 0.0
    %326 = vmatpush1.msra.mxu0 0.0
    %327 = vmatprep.subr.mxu0 0.0
    %328 = vmatpush1.msra.mxu0 0.0
    %329 = vmatprep.subr.mxu0 0.0
    %330 = vmatpush1.msra.mxu0 0.0
    %331 = vmatprep.subr.mxu0 0.0
    %332 = vmatpush1.msra.mxu0 0.0
    %333 = vmatprep.subr.mxu0 0.0
    %334 = vmatpush1.msra.mxu0 0.0
    %335 = vmatprep.subr.mxu0 0.0
    %336 = vmatpush1.msra.mxu0 0.0
    %337 = vmatprep.subr.mxu0 0.0
    %338 = vmatpush1.msra.mxu0 0.0
    %339 = vmatprep.subr.mxu0 0.0
    %340 = vmatpush1.msra.mxu0 0.0
    %341 = vmatprep.subr.mxu0 0.0
    %342 = vmatpush1.msra.mxu0 0.0
    %343 = vmatprep.subr.mxu0 0.0
    %344 = vmatpush1.msra.mxu0 0.0
    %345 = vmatprep.subr.mxu0 0.0
    %346 = vmatpush1.msra.mxu0 0.0
    %347 = vmatprep.subr.mxu0 0.0
    %348 = vmatpush1.msra.mxu0 0.0
    %349 = vmatprep.subr.mxu0 0.0
    %350 = vmatpush1.msra.mxu0 0.0
    %351 = vmatprep.subr.mxu0 0.0
    %352 = vmatpush1.msra.mxu0 0.0
    %353 = vmatprep.subr.mxu0 0.0
    %354 = vmatpush1.msra.mxu0 0.0
    %355 = vmatprep.subr.mxu0 0.0
    %356 = vmatpush1.msra.mxu0 0.0
    %357 = vmatprep.subr.mxu0 0.0
    %358 = vmatpush1.msra.mxu0 0.0
    %359 = vmatprep.subr.mxu0 0.0
    %360 = vmatpush1.msra.mxu0 0.0
    %361 = vmatprep.subr.mxu0 0.0
    %362 = vmatpush1.msra.mxu0 0.0
    %363 = vmatprep.subr.mxu0 0.0
    %364 = vmatpush1.msra.mxu0 0.0
    %365 = vmatprep.subr.mxu0 0.0
    %366 = vmatpush1.msra.mxu0 0.0
    %367 = vmatprep.subr.mxu0 0.0
    %368 = vmatpush1.msra.mxu0 0.0
    %369 = vmatprep.subr.mxu0 0.0
    %370 = vmatpush1.msra.mxu0 0.0
    %371 = vmatprep.subr.mxu0 0.0
    %372 = vmatpush1.msra.mxu0 0.0
    %373 = vmatprep.mubr.f32.mxu0 0.0
    %374 = vmatmul.mubr.f32.gmra.mrb[0].mxu0 %v307
    %v375 = vpop.f32.mrb[0].mxu0
    %v376 = vadd.f32 0.0, %v375
    %v377 = vpop.f32.mrb[0].mxu0
    %378 = vdwg.mxu0
    %v379 = vadd.f32 %v267, %v376
    %v380 = vxor.u32 %v379, 2147483648
    %v381 = vmul.f32 %v380, 1.442695
    %v382 = vpow.pop %v381
    %v383 = vadd.f32 %v382, 1.0
    %v384 = vrcp.pop %v383
    %v385 = vmul.f32 1.0, %v384
    %v386 = vtanh.pop %v379
    %v387 = vmul.f32 %v385, 0.0
    %389 = vrot.lane.b32.xlu0 %v386, 64
    %v390 = vpop.permute.xlu0 %389
    %v392 = vmul.f32 %v385, %v390
    %394 = vrot.lane.b32.xlu0 %v392, 32
    %v395 = vpop.permute.xlu0 %394
    %v397 = vadd.f32 %v387, %v395
    %v398 = vtanh.pop %v397
    %400 = vrot.lane.b32.xlu0 %v398, 64
    %v401 = vpop.permute.xlu0 %400
    %v403 = vmul.f32 %v385, %v401
    %405 = vrot.lane.b32.xlu0 %v403, 32
    %v406 = vpop.permute.xlu0 %405
    %v407 = vsel %vm305, %v406, 0
    %409 = vmatprep.subr.mxu0 0.0
    %410 = vmatpush1.msra.mxu0 %v31
    %411 = vmatprep.subr.mxu0 0.0
    %412 = vmatpush1.msra.mxu0 %v32
    %413 = vmatprep.subr.mxu0 0.0
    %414 = vmatpush1.msra.mxu0 %v33
    %415 = vmatprep.subr.mxu0 0.0
    %416 = vmatpush1.msra.mxu0 %v34
    %417 = vmatprep.subr.mxu0 0.0
    %418 = vmatpush1.msra.mxu0 0.0
    %419 = vmatprep.subr.mxu0 0.0
    %420 = vmatpush1.msra.mxu0 0.0
    %421 = vmatprep.subr.mxu0 0.0
    %422 = vmatpush1.msra.mxu0 0.0
    %423 = vmatprep.subr.mxu0 0.0
    %424 = vmatpush1.msra.mxu0 0.0
    %425 = vmatprep.subr.mxu0 0.0
    %426 = vmatpush1.msra.mxu0 0.0
    %427 = vmatprep.subr.mxu0 0.0
    %428 = vmatpush1.msra.mxu0 0.0
    %429 = vmatprep.subr.mxu0 0.0
    %430 = vmatpush1.msra.mxu0 0.0
    %431 = vmatprep.subr.mxu0 0.0
    %432 = vmatpush1.msra.mxu0 0.0
    %433 = vmatprep.subr.mxu0 0.0
    %434 = vmatpush1.msra.mxu0 0.0
    %435 = vmatprep.subr.mxu0 0.0
    %436 = vmatpush1.msra.mxu0 0.0
    %437 = vmatprep.subr.mxu0 0.0
    %438 = vmatpush1.msra.mxu0 0.0
    %439 = vmatprep.subr.mxu0 0.0
    %440 = vmatpush1.msra.mxu0 0.0
    %441 = vmatprep.subr.mxu0 0.0
    %442 = vmatpush1.msra.mxu0 0.0
    %443 = vmatprep.subr.mxu0 0.0
    %444 = vmatpush1.msra.mxu0 0.0
    %445 = vmatprep.subr.mxu0 0.0
    %446 = vmatpush1.msra.mxu0 0.0
    %447 = vmatprep.subr.mxu0 0.0
    %448 = vmatpush1.msra.mxu0 0.0
    %449 = vmatprep.subr.mxu0 0.0
    %450 = vmatpush1.msra.mxu0 0.0
    %451 = vmatprep.subr.mxu0 0.0
    %452 = vmatpush1.msra.mxu0 0.0
    %453 = vmatprep.subr.mxu0 0.0
    %454 = vmatpush1.msra.mxu0 0.0
    %455 = vmatprep.subr.mxu0 0.0
    %456 = vmatpush1.msra.mxu0 0.0
    %457 = vmatprep.subr.mxu0 0.0
    %458 = vmatpush1.msra.mxu0 0.0
    %459 = vmatprep.subr.mxu0 0.0
    %460 = vmatpush1.msra.mxu0 0.0
    %461 = vmatprep.subr.mxu0 0.0
    %462 = vmatpush1.msra.mxu0 0.0
    %463 = vmatprep.subr.mxu0 0.0
    %464 = vmatpush1.msra.mxu0 0.0
    %465 = vmatprep.subr.mxu0 0.0
    %466 = vmatpush1.msra.mxu0 0.0
    %467 = vmatprep.subr.mxu0 0.0
    %468 = vmatpush1.msra.mxu0 0.0
    %469 = vmatprep.subr.mxu0 0.0
    %470 = vmatpush1.msra.mxu0 0.0
    %471 = vmatprep.subr.mxu0 0.0
    %472 = vmatpush1.msra.mxu0 0.0
    %473 = vmatprep.mubr.f32.mxu0 0.0
    %474 = vmatmul.mubr.f32.gmra.mrb[0].mxu0 %v407
    %v475 = vpop.f32.mrb[0].mxu0
    %v476 = vadd.f32 0.0, %v475
    %v477 = vpop.f32.mrb[0].mxu0
    %478 = vdwg.mxu0
    %v479 = vadd.f32 %v272, %v476
    %v480 = vxor.u32 %v479, 2147483648
    %v481 = vmul.f32 %v480, 1.442695
    %v482 = vpow.pop %v481
    %v483 = vadd.f32 %v482, 1.0
    %v484 = vrcp.pop %v483
    %v485 = vmul.f32 1.0, %v484
    %v486 = vtanh.pop %v479
    %v487 = vmul.f32 %v485, %v397
    %489 = vrot.lane.b32.xlu0 %v486, 64
    %v490 = vpop.permute.xlu0 %489
    %v492 = vmul.f32 %v485, %v490
    %494 = vrot.lane.b32.xlu0 %v492, 32
    %v495 = vpop.permute.xlu0 %494
    %v497 = vadd.f32 %v487, %v495
    %v498 = vtanh.pop %v497
    %500 = vrot.lane.b32.xlu0 %v498, 64
    %v501 = vpop.permute.xlu0 %500
    %v503 = vmul.f32 %v485, %v501
    %505 = vrot.lane.b32.xlu0 %v503, 32
    %v506 = vpop.permute.xlu0 %505
    %v507 = vsel %vm305, %v506, 0
    %509 = vmatprep.subr.mxu0 0.0
    %510 = vmatpush1.msra.mxu0 %v31
    %511 = vmatprep.subr.mxu0 0.0
    %512 = vmatpush1.msra.mxu0 %v32
    %513 = vmatprep.subr.mxu0 0.0
    %514 = vmatpush1.msra.mxu0 %v33
    %515 = vmatprep.subr.mxu0 0.0
    %516 = vmatpush1.msra.mxu0 %v34
    %517 = vmatprep.subr.mxu0 0.0
    %518 = vmatpush1.msra.mxu0 0.0
    %519 = vmatprep.subr.mxu0 0.0
    %520 = vmatpush1.msra.mxu0 0.0
    %521 = vmatprep.subr.mxu0 0.0
    %522 = vmatpush1.msra.mxu0 0.0
    %523 = vmatprep.subr.mxu0 0.0
    %524 = vmatpush1.msra.mxu0 0.0
    %525 = vmatprep.subr.mxu0 0.0
    %526 = vmatpush1.msra.mxu0 0.0
    %527 = vmatprep.subr.mxu0 0.0
    %528 = vmatpush1.msra.mxu0 0.0
    %529 = vmatprep.subr.mxu0 0.0
    %530 = vmatpush1.msra.mxu0 0.0
    %531 = vmatprep.subr.mxu0 0.0
    %532 = vmatpush1.msra.mxu0 0.0
    %533 = vmatprep.subr.mxu0 0.0
    %534 = vmatpush1.msra.mxu0 0.0
    %535 = vmatprep.subr.mxu0 0.0
    %536 = vmatpush1.msra.mxu0 0.0
    %537 = vmatprep.subr.mxu0 0.0
    %538 = vmatpush1.msra.mxu0 0.0
    %539 = vmatprep.subr.mxu0 0.0
    %540 = vmatpush1.msra.mxu0 0.0
    %541 = vmatprep.subr.mxu0 0.0
    %542 = vmatpush1.msra.mxu0 0.0
    %543 = vmatprep.subr.mxu0 0.0
    %544 = vmatpush1.msra.mxu0 0.0
    %545 = vmatprep.subr.mxu0 0.0
    %546 = vmatpush1.msra.mxu0 0.0
    %547 = vmatprep.subr.mxu0 0.0
    %548 = vmatpush1.msra.mxu0 0.0
    %549 = vmatprep.subr.mxu0 0.0
    %550 = vmatpush1.msra.mxu0 0.0
    %551 = vmatprep.subr.mxu0 0.0
    %552 = vmatpush1.msra.mxu0 0.0
    %553 = vmatprep.subr.mxu0 0.0
    %554 = vmatpush1.msra.mxu0 0.0
    %555 = vmatprep.subr.mxu0 0.0
    %556 = vmatpush1.msra.mxu0 0.0
    %557 = vmatprep.subr.mxu0 0.0
    %558 = vmatpush1.msra.mxu0 0.0
    %559 = vmatprep.subr.mxu0 0.0
    %560 = vmatpush1.msra.mxu0 0.0
    %561 = vmatprep.subr.mxu0 0.0
    %562 = vmatpush1.msra.mxu0 0.0
    %563 = vmatprep.subr.mxu0 0.0
    %564 = vmatpush1.msra.mxu0 0.0
    %565 = vmatprep.subr.mxu0 0.0
    %566 = vmatpush1.msra.mxu0 0.0
    %567 = vmatprep.subr.mxu0 0.0
    %568 = vmatpush1.msra.mxu0 0.0
    %569 = vmatprep.subr.mxu0 0.0
    %570 = vmatpush1.msra.mxu0 0.0
    %571 = vmatprep.subr.mxu0 0.0
    %572 = vmatpush1.msra.mxu0 0.0
    %573 = vmatprep.mubr.f32.mxu0 0.0
    %574 = vmatmul.mubr.f32.gmra.mrb[0].mxu0 %v507
    %v575 = vpop.f32.mrb[0].mxu0
    %v576 = vadd.f32 0.0, %v575
    %v577 = vpop.f32.mrb[0].mxu0
    %578 = vdwg.mxu0
    %v579 = vadd.f32 %v277, %v576
    %v580 = vxor.u32 %v579, 2147483648
    %v581 = vmul.f32 %v580, 1.442695
    %v582 = vpow.pop %v581
    %v583 = vadd.f32 %v582, 1.0
    %v584 = vrcp.pop %v583
    %v585 = vmul.f32 1.0, %v584
    %v586 = vtanh.pop %v579
    %v587 = vmul.f32 %v585, %v497
    %589 = vrot.lane.b32.xlu0 %v586, 64
    %v590 = vpop.permute.xlu0 %589
    %v592 = vmul.f32 %v585, %v590
    %594 = vrot.lane.b32.xlu0 %v592, 32
    %v595 = vpop.permute.xlu0 %594
    %v597 = vadd.f32 %v587, %v595
    %v598 = vtanh.pop %v597
    %600 = vrot.lane.b32.xlu0 %v598, 64
    %v601 = vpop.permute.xlu0 %600
    %v603 = vmul.f32 %v585, %v601
    %605 = vrot.lane.b32.xlu0 %v603, 32
    %v606 = vpop.permute.xlu0 %605
    %v607 = vsel %vm305, %v606, 0
    %609 = vmatprep.subr.mxu0 0.0
    %610 = vmatpush1.msra.mxu0 %v31
    %611 = vmatprep.subr.mxu0 0.0
    %612 = vmatpush1.msra.mxu0 %v32
    %613 = vmatprep.subr.mxu0 0.0
    %614 = vmatpush1.msra.mxu0 %v33
    %615 = vmatprep.subr.mxu0 0.0
    %616 = vmatpush1.msra.mxu0 %v34
    %617 = vmatprep.subr.mxu0 0.0
    %618 = vmatpush1.msra.mxu0 0.0
    %619 = vmatprep.subr.mxu0 0.0
    %620 = vmatpush1.msra.mxu0 0.0
    %621 = vmatprep.subr.mxu0 0.0
    %622 = vmatpush1.msra.mxu0 0.0
    %623 = vmatprep.subr.mxu0 0.0
    %624 = vmatpush1.msra.mxu0 0.0
    %625 = vmatprep.subr.mxu0 0.0
    %626 = vmatpush1.msra.mxu0 0.0
    %627 = vmatprep.subr.mxu0 0.0
    %628 = vmatpush1.msra.mxu0 0.0
    %629 = vmatprep.subr.mxu0 0.0
    %630 = vmatpush1.msra.mxu0 0.0
    %631 = vmatprep.subr.mxu0 0.0
    %632 = vmatpush1.msra.mxu0 0.0
    %633 = vmatprep.subr.mxu0 0.0
    %634 = vmatpush1.msra.mxu0 0.0
    %635 = vmatprep.subr.mxu0 0.0
    %636 = vmatpush1.msra.mxu0 0.0
    %637 = vmatprep.subr.mxu0 0.0
    %638 = vmatpush1.msra.mxu0 0.0
    %639 = vmatprep.subr.mxu0 0.0
    %640 = vmatpush1.msra.mxu0 0.0
    %641 = vmatprep.subr.mxu0 0.0
    %642 = vmatpush1.msra.mxu0 0.0
    %643 = vmatprep.subr.mxu0 0.0
    %644 = vmatpush1.msra.mxu0 0.0
    %645 = vmatprep.subr.mxu0 0.0
    %646 = vmatpush1.msra.mxu0 0.0
    %647 = vmatprep.subr.mxu0 0.0
    %648 = vmatpush1.msra.mxu0 0.0
    %649 = vmatprep.subr.mxu0 0.0
    %650 = vmatpush1.msra.mxu0 0.0
    %651 = vmatprep.subr.mxu0 0.0
    %652 = vmatpush1.msra.mxu0 0.0
    %653 = vmatprep.subr.mxu0 0.0
    %654 = vmatpush1.msra.mxu0 0.0
    %655 = vmatprep.subr.mxu0 0.0
    %656 = vmatpush1.msra.mxu0 0.0
    %657 = vmatprep.subr.mxu0 0.0
    %658 = vmatpush1.msra.mxu0 0.0
    %659 = vmatprep.subr.mxu0 0.0
    %660 = vmatpush1.msra.mxu0 0.0
    %661 = vmatprep.subr.mxu0 0.0
    %662 = vmatpush1.msra.mxu0 0.0
    %663 = vmatprep.subr.mxu0 0.0
    %664 = vmatpush1.msra.mxu0 0.0
    %665 = vmatprep.subr.mxu0 0.0
    %666 = vmatpush1.msra.mxu0 0.0
    %667 = vmatprep.subr.mxu0 0.0
    %668 = vmatpush1.msra.mxu0 0.0
    %669 = vmatprep.subr.mxu0 0.0
    %670 = vmatpush1.msra.mxu0 0.0
    %671 = vmatprep.subr.mxu0 0.0
    %672 = vmatpush1.msra.mxu0 0.0
    %673 = vmatprep.mubr.f32.mxu0 0.0
    %674 = vmatmul.mubr.f32.gmra.mrb[0].mxu0 %v607
    %v675 = vpop.f32.mrb[0].mxu0
    %v676 = vadd.f32 0.0, %v675
    %v677 = vpop.f32.mrb[0].mxu0
    %678 = vdwg.mxu0
    %v679 = vadd.f32 %v282, %v676
    %v680 = vxor.u32 %v679, 2147483648
    %v681 = vmul.f32 %v680, 1.442695
    %v682 = vpow.pop %v681
    %v683 = vadd.f32 %v682, 1.0
    %v684 = vrcp.pop %v683
    %v685 = vmul.f32 1.0, %v684
    %v686 = vtanh.pop %v679
    %v687 = vmul.f32 %v685, %v597
    %689 = vrot.lane.b32.xlu0 %v686, 64
    %v690 = vpop.permute.xlu0 %689
    %v692 = vmul.f32 %v685, %v690
    %694 = vrot.lane.b32.xlu0 %v692, 32
    %v695 = vpop.permute.xlu0 %694
    %v697 = vadd.f32 %v687, %v695
    %v698 = vtanh.pop %v697
    %700 = vrot.lane.b32.xlu0 %v698, 64
    %v701 = vpop.permute.xlu0 %700
    %v703 = vmul.f32 %v685, %v701
    %705 = vrot.lane.b32.xlu0 %v703, 32
    %v706 = vpop.permute.xlu0 %705
    %v707 = vsel %vm305, %v706, 0
    %709 = vmatprep.subr.mxu0 0.0
    %710 = vmatpush1.msra.mxu0 %v31
    %711 = vmatprep.subr.mxu0 0.0
    %712 = vmatpush1.msra.mxu0 %v32
    %713 = vmatprep.subr.mxu0 0.0
    %714 = vmatpush1.msra.mxu0 %v33
    %715 = vmatprep.subr.mxu0 0.0
    %716 = vmatpush1.msra.mxu0 %v34
    %717 = vmatprep.subr.mxu0 0.0
    %718 = vmatpush1.msra.mxu0 0.0
    %719 = vmatprep.subr.mxu0 0.0
    %720 = vmatpush1.msra.mxu0 0.0
    %721 = vmatprep.subr.mxu0 0.0
    %722 = vmatpush1.msra.mxu0 0.0
    %723 = vmatprep.subr.mxu0 0.0
    %724 = vmatpush1.msra.mxu0 0.0
    %725 = vmatprep.subr.mxu0 0.0
    %726 = vmatpush1.msra.mxu0 0.0
    %727 = vmatprep.subr.mxu0 0.0
    %728 = vmatpush1.msra.mxu0 0.0
    %729 = vmatprep.subr.mxu0 0.0
    %730 = vmatpush1.msra.mxu0 0.0
    %731 = vmatprep.subr.mxu0 0.0
    %732 = vmatpush1.msra.mxu0 0.0
    %733 = vmatprep.subr.mxu0 0.0
    %734 = vmatpush1.msra.mxu0 0.0
    %735 = vmatprep.subr.mxu0 0.0
    %736 = vmatpush1.msra.mxu0 0.0
    %737 = vmatprep.subr.mxu0 0.0
    %738 = vmatpush1.msra.mxu0 0.0
    %739 = vmatprep.subr.mxu0 0.0
    %740 = vmatpush1.msra.mxu0 0.0
    %741 = vmatprep.subr.mxu0 0.0
    %742 = vmatpush1.msra.mxu0 0.0
    %743 = vmatprep.subr.mxu0 0.0
    %744 = vmatpush1.msra.mxu0 0.0
    %745 = vmatprep.subr.mxu0 0.0
    %746 = vmatpush1.msra.mxu0 0.0
    %747 = vmatprep.subr.mxu0 0.0
    %748 = vmatpush1.msra.mxu0 0.0
    %749 = vmatprep.subr.mxu0 0.0
    %750 = vmatpush1.msra.mxu0 0.0
    %751 = vmatprep.subr.mxu0 0.0
    %752 = vmatpush1.msra.mxu0 0.0
    %753 = vmatprep.subr.mxu0 0.0
    %754 = vmatpush1.msra.mxu0 0.0
    %755 = vmatprep.subr.mxu0 0.0
    %756 = vmatpush1.msra.mxu0 0.0
    %757 = vmatprep.subr.mxu0 0.0
    %758 = vmatpush1.msra.mxu0 0.0
    %759 = vmatprep.subr.mxu0 0.0
    %760 = vmatpush1.msra.mxu0 0.0
    %761 = vmatprep.subr.mxu0 0.0
    %762 = vmatpush1.msra.mxu0 0.0
    %763 = vmatprep.subr.mxu0 0.0
    %764 = vmatpush1.msra.mxu0 0.0
    %765 = vmatprep.subr.mxu0 0.0
    %766 = vmatpush1.msra.mxu0 0.0
    %767 = vmatprep.subr.mxu0 0.0
    %768 = vmatpush1.msra.mxu0 0.0
    %769 = vmatprep.subr.mxu0 0.0
    %770 = vmatpush1.msra.mxu0 0.0
    %771 = vmatprep.subr.mxu0 0.0
    %772 = vmatpush1.msra.mxu0 0.0
    %773 = vmatprep.mubr.f32.mxu0 0.0
    %774 = vmatmul.mubr.f32.gmra.mrb[0].mxu0 %v707
    %v775 = vpop.f32.mrb[0].mxu0
    %v776 = vadd.f32 0.0, %v775
    %v777 = vpop.f32.mrb[0].mxu0
    %778 = vdwg.mxu0
    %v779 = vadd.f32 %v287, %v776
    %v780 = vxor.u32 %v779, 2147483648
    %v781 = vmul.f32 %v780, 1.442695
    %v782 = vpow.pop %v781
    %v783 = vadd.f32 %v782, 1.0
    %v784 = vrcp.pop %v783
    %v785 = vmul.f32 1.0, %v784
    %v786 = vtanh.pop %v779
    %v787 = vmul.f32 %v785, %v697
    %789 = vrot.lane.b32.xlu0 %v786, 64
    %v790 = vpop.permute.xlu0 %789
    %v792 = vmul.f32 %v785, %v790
    %794 = vrot.lane.b32.xlu0 %v792, 32
    %v795 = vpop.permute.xlu0 %794
    %v797 = vadd.f32 %v787, %v795
    %v798 = vtanh.pop %v797
    %800 = vrot.lane.b32.xlu0 %v798, 64
    %v801 = vpop.permute.xlu0 %800
    %v803 = vmul.f32 %v785, %v801
    %805 = vrot.lane.b32.xlu0 %v803, 32
    %v806 = vpop.permute.xlu0 %805
    %v807 = vsel %vm305, %v806, 0
    %809 = vmatprep.subr.mxu0 0.0
    %810 = vmatpush1.msra.mxu0 %v31
    %811 = vmatprep.subr.mxu0 0.0
    %812 = vmatpush1.msra.mxu0 %v32
    %813 = vmatprep.subr.mxu0 0.0
    %814 = vmatpush1.msra.mxu0 %v33
    %815 = vmatprep.subr.mxu0 0.0
    %816 = vmatpush1.msra.mxu0 %v34
    %817 = vmatprep.subr.mxu0 0.0
    %818 = vmatpush1.msra.mxu0 0.0
    %819 = vmatprep.subr.mxu0 0.0
    %820 = vmatpush1.msra.mxu0 0.0
    %821 = vmatprep.subr.mxu0 0.0
    %822 = vmatpush1.msra.mxu0 0.0
    %823 = vmatprep.subr.mxu0 0.0
    %824 = vmatpush1.msra.mxu0 0.0
    %825 = vmatprep.subr.mxu0 0.0
    %826 = vmatpush1.msra.mxu0 0.0
    %827 = vmatprep.subr.mxu0 0.0
    %828 = vmatpush1.msra.mxu0 0.0
    %829 = vmatprep.subr.mxu0 0.0
    %830 = vmatpush1.msra.mxu0 0.0
    %831 = vmatprep.subr.mxu0 0.0
    %832 = vmatpush1.msra.mxu0 0.0
    %833 = vmatprep.subr.mxu0 0.0
    %834 = vmatpush1.msra.mxu0 0.0
    %835 = vmatprep.subr.mxu0 0.0
    %836 = vmatpush1.msra.mxu0 0.0
    %837 = vmatprep.subr.mxu0 0.0
    %838 = vmatpush1.msra.mxu0 0.0
    %839 = vmatprep.subr.mxu0 0.0
    %840 = vmatpush1.msra.mxu0 0.0
    %841 = vmatprep.subr.mxu0 0.0
    %842 = vmatpush1.msra.mxu0 0.0
    %843 = vmatprep.subr.mxu0 0.0
    %844 = vmatpush1.msra.mxu0 0.0
    %845 = vmatprep.subr.mxu0 0.0
    %846 = vmatpush1.msra.mxu0 0.0
    %847 = vmatprep.subr.mxu0 0.0
    %848 = vmatpush1.msra.mxu0 0.0
    %849 = vmatprep.subr.mxu0 0.0
    %850 = vmatpush1.msra.mxu0 0.0
    %851 = vmatprep.subr.mxu0 0.0
    %852 = vmatpush1.msra.mxu0 0.0
    %853 = vmatprep.subr.mxu0 0.0
    %854 = vmatpush1.msra.mxu0 0.0
    %855 = vmatprep.subr.mxu0 0.0
    %856 = vmatpush1.msra.mxu0 0.0
    %857 = vmatprep.subr.mxu0 0.0
    %858 = vmatpush1.msra.mxu0 0.0
    %859 = vmatprep.subr.mxu0 0.0
    %860 = vmatpush1.msra.mxu0 0.0
    %861 = vmatprep.subr.mxu0 0.0
    %862 = vmatpush1.msra.mxu0 0.0
    %863 = vmatprep.subr.mxu0 0.0
    %864 = vmatpush1.msra.mxu0 0.0
    %865 = vmatprep.subr.mxu0 0.0
    %866 = vmatpush1.msra.mxu0 0.0
    %867 = vmatprep.subr.mxu0 0.0
    %868 = vmatpush1.msra.mxu0 0.0
    %869 = vmatprep.subr.mxu0 0.0
    %870 = vmatpush1.msra.mxu0 0.0
    %871 = vmatprep.subr.mxu0 0.0
    %872 = vmatpush1.msra.mxu0 0.0
    %873 = vmatprep.mubr.f32.mxu0 0.0
    %874 = vmatmul.mubr.f32.gmra.mrb[0].mxu0 %v807
    %v875 = vpop.f32.mrb[0].mxu0
    %v876 = vadd.f32 0.0, %v875
    %v877 = vpop.f32.mrb[0].mxu0
    %878 = vdwg.mxu0
    %v879 = vadd.f32 %v292, %v876
    %v880 = vxor.u32 %v879, 2147483648
    %v881 = vmul.f32 %v880, 1.442695
    %v882 = vpow.pop %v881
    %v883 = vadd.f32 %v882, 1.0
    %v884 = vrcp.pop %v883
    %v885 = vmul.f32 1.0, %v884
    %v886 = vtanh.pop %v879
    %v887 = vmul.f32 %v885, %v797
    %889 = vrot.lane.b32.xlu0 %v886, 64
    %v890 = vpop.permute.xlu0 %889
    %v892 = vmul.f32 %v885, %v890
    %894 = vrot.lane.b32.xlu0 %v892, 32
    %v895 = vpop.permute.xlu0 %894
    %v897 = vadd.f32 %v887, %v895
    %v898 = vtanh.pop %v897
    %900 = vrot.lane.b32.xlu0 %v898, 64
    %v901 = vpop.permute.xlu0 %900
    %v903 = vmul.f32 %v885, %v901
    %905 = vrot.lane.b32.xlu0 %v903, 32
    %v906 = vpop.permute.xlu0 %905
    %v907 = vsel %vm305, %v906, 0
    %909 = vmatprep.subr.mxu0 0.0
    %910 = vmatpush1.msra.mxu0 %v31
    %911 = vmatprep.subr.mxu0 0.0
    %912 = vmatpush1.msra.mxu0 %v32
    %913 = vmatprep.subr.mxu0 0.0
    %914 = vmatpush1.msra.mxu0 %v33
    %915 = vmatprep.subr.mxu0 0.0
    %916 = vmatpush1.msra.mxu0 %v34
    %917 = vmatprep.subr.mxu0 0.0
    %918 = vmatpush1.msra.mxu0 0.0
    %919 = vmatprep.subr.mxu0 0.0
    %920 = vmatpush1.msra.mxu0 0.0
    %921 = vmatprep.subr.mxu0 0.0
    %922 = vmatpush1.msra.mxu0 0.0
    %923 = vmatprep.subr.mxu0 0.0
    %924 = vmatpush1.msra.mxu0 0.0
    %925 = vmatprep.subr.mxu0 0.0
    %926 = vmatpush1.msra.mxu0 0.0
    %927 = vmatprep.subr.mxu0 0.0
    %928 = vmatpush1.msra.mxu0 0.0
    %929 = vmatprep.subr.mxu0 0.0
    %930 = vmatpush1.msra.mxu0 0.0
    %931 = vmatprep.subr.mxu0 0.0
    %932 = vmatpush1.msra.mxu0 0.0
    %933 = vmatprep.subr.mxu0 0.0
    %934 = vmatpush1.msra.mxu0 0.0
    %935 = vmatprep.subr.mxu0 0.0
    %936 = vmatpush1.msra.mxu0 0.0
    %937 = vmatprep.subr.mxu0 0.0
    %938 = vmatpush1.msra.mxu0 0.0
    %939 = vmatprep.subr.mxu0 0.0
    %940 = vmatpush1.msra.mxu0 0.0
    %941 = vmatprep.subr.mxu0 0.0
    %942 = vmatpush1.msra.mxu0 0.0
    %943 = vmatprep.subr.mxu0 0.0
    %944 = vmatpush1.msra.mxu0 0.0
    %945 = vmatprep.subr.mxu0 0.0
    %946 = vmatpush1.msra.mxu0 0.0
    %947 = vmatprep.subr.mxu0 0.0
    %948 = vmatpush1.msra.mxu0 0.0
    %949 = vmatprep.subr.mxu0 0.0
    %950 = vmatpush1.msra.mxu0 0.0
    %951 = vmatprep.subr.mxu0 0.0
    %952 = vmatpush1.msra.mxu0 0.0
    %953 = vmatprep.subr.mxu0 0.0
    %954 = vmatpush1.msra.mxu0 0.0
    %955 = vmatprep.subr.mxu0 0.0
    %956 = vmatpush1.msra.mxu0 0.0
    %957 = vmatprep.subr.mxu0 0.0
    %958 = vmatpush1.msra.mxu0 0.0
    %959 = vmatprep.subr.mxu0 0.0
    %960 = vmatpush1.msra.mxu0 0.0
    %961 = vmatprep.subr.mxu0 0.0
    %962 = vmatpush1.msra.mxu0 0.0
    %963 = vmatprep.subr.mxu0 0.0
    %964 = vmatpush1.msra.mxu0 0.0
    %965 = vmatprep.subr.mxu0 0.0
    %966 = vmatpush1.msra.mxu0 0.0
    %967 = vmatprep.subr.mxu0 0.0
    %968 = vmatpush1.msra.mxu0 0.0
    %969 = vmatprep.subr.mxu0 0.0
    %970 = vmatpush1.msra.mxu0 0.0
    %971 = vmatprep.subr.mxu0 0.0
    %972 = vmatpush1.msra.mxu0 0.0
    %973 = vmatprep.mubr.f32.mxu0 0.0
    %974 = vmatmul.mubr.f32.gmra.mrb[0].mxu0 %v907
    %v975 = vpop.f32.mrb[0].mxu0
    %v976 = vadd.f32 0.0, %v975
    %v977 = vpop.f32.mrb[0].mxu0
    %978 = vdwg.mxu0
    %v979 = vadd.f32 %v297, %v976
    %v980 = vxor.u32 %v979, 2147483648
    %v981 = vmul.f32 %v980, 1.442695
    %v982 = vpow.pop %v981
    %v983 = vadd.f32 %v982, 1.0
    %v984 = vrcp.pop %v983
    %v985 = vmul.f32 1.0, %v984
    %v986 = vtanh.pop %v979
    %v987 = vmul.f32 %v985, %v897
    %989 = vrot.lane.b32.xlu0 %v986, 64
    %v990 = vpop.permute.xlu0 %989
    %v992 = vmul.f32 %v985, %v990
    %994 = vrot.lane.b32.xlu0 %v992, 32
    %v995 = vpop.permute.xlu0 %994
    %v997 = vadd.f32 %v987, %v995
    %v998 = vtanh.pop %v997
    %1000 = vrot.lane.b32.xlu0 %v998, 64
    %v1001 = vpop.permute.xlu0 %1000
    %v1003 = vmul.f32 %v985, %v1001
    %1005 = vrot.lane.b32.xlu0 %v1003, 32
    %v1006 = vpop.permute.xlu0 %1005
    %v1007 = vsel %vm305, %v1006, 0
    %1009 = vmatprep.subr.mxu0 0.0
    %1010 = vmatpush1.msra.mxu0 %v31
    %1011 = vmatprep.subr.mxu0 0.0
    %1012 = vmatpush1.msra.mxu0 %v32
    %1013 = vmatprep.subr.mxu0 0.0
    %1014 = vmatpush1.msra.mxu0 %v33
    %1015 = vmatprep.subr.mxu0 0.0
    %1016 = vmatpush1.msra.mxu0 %v34
    %1017 = vmatprep.subr.mxu0 0.0
    %1018 = vmatpush1.msra.mxu0 0.0
    %1019 = vmatprep.subr.mxu0 0.0
    %1020 = vmatpush1.msra.mxu0 0.0
    %1021 = vmatprep.subr.mxu0 0.0
    %1022 = vmatpush1.msra.mxu0 0.0
    %1023 = vmatprep.subr.mxu0 0.0
    %1024 = vmatpush1.msra.mxu0 0.0
    %1025 = vmatprep.subr.mxu0 0.0
    %1026 = vmatpush1.msra.mxu0 0.0
    %1027 = vmatprep.subr.mxu0 0.0
    %1028 = vmatpush1.msra.mxu0 0.0
    %1029 = vmatprep.subr.mxu0 0.0
    %1030 = vmatpush1.msra.mxu0 0.0
    %1031 = vmatprep.subr.mxu0 0.0
    %1032 = vmatpush1.msra.mxu0 0.0
    %1033 = vmatprep.subr.mxu0 0.0
    %1034 = vmatpush1.msra.mxu0 0.0
    %1035 = vmatprep.subr.mxu0 0.0
    %1036 = vmatpush1.msra.mxu0 0.0
    %1037 = vmatprep.subr.mxu0 0.0
    %1038 = vmatpush1.msra.mxu0 0.0
    %1039 = vmatprep.subr.mxu0 0.0
    %1040 = vmatpush1.msra.mxu0 0.0
    %1041 = vmatprep.subr.mxu0 0.0
    %1042 = vmatpush1.msra.mxu0 0.0
    %1043 = vmatprep.subr.mxu0 0.0
    %1044 = vmatpush1.msra.mxu0 0.0
    %1045 = vmatprep.subr.mxu0 0.0
    %1046 = vmatpush1.msra.mxu0 0.0
    %1047 = vmatprep.subr.mxu0 0.0
    %1048 = vmatpush1.msra.mxu0 0.0
    %1049 = vmatprep.subr.mxu0 0.0
    %1050 = vmatpush1.msra.mxu0 0.0
    %1051 = vmatprep.subr.mxu0 0.0
    %1052 = vmatpush1.msra.mxu0 0.0
    %1053 = vmatprep.subr.mxu0 0.0
    %1054 = vmatpush1.msra.mxu0 0.0
    %1055 = vmatprep.subr.mxu0 0.0
    %1056 = vmatpush1.msra.mxu0 0.0
    %1057 = vmatprep.subr.mxu0 0.0
    %1058 = vmatpush1.msra.mxu0 0.0
    %1059 = vmatprep.subr.mxu0 0.0
    %1060 = vmatpush1.msra.mxu0 0.0
    %1061 = vmatprep.subr.mxu0 0.0
    %1062 = vmatpush1.msra.mxu0 0.0
    %1063 = vmatprep.subr.mxu0 0.0
    %1064 = vmatpush1.msra.mxu0 0.0
    %1065 = vmatprep.subr.mxu0 0.0
    %1066 = vmatpush1.msra.mxu0 0.0
    %1067 = vmatprep.subr.mxu0 0.0
    %1068 = vmatpush1.msra.mxu0 0.0
    %1069 = vmatprep.subr.mxu0 0.0
    %1070 = vmatpush1.msra.mxu0 0.0
    %1071 = vmatprep.subr.mxu0 0.0
    %1072 = vmatpush1.msra.mxu0 0.0
    %1073 = vmatprep.mubr.f32.mxu0 0.0
    %1074 = vmatmul.mubr.f32.gmra.mrb[0].mxu0 %v1007
    %v1075 = vpop.f32.mrb[0].mxu0
    %v1076 = vadd.f32 0.0, %v1075
    %v1077 = vpop.f32.mrb[0].mxu0
    %1078 = vdwg.mxu0
    %v1079 = vadd.f32 %v302, %v1076
    %v1080 = vxor.u32 %v1079, 2147483648
    %v1081 = vmul.f32 %v1080, 1.442695
    %v1082 = vpow.pop %v1081
    %v1083 = vadd.f32 %v1082, 1.0
    %v1084 = vrcp.pop %v1083
    %v1085 = vmul.f32 1.0, %v1084
    %v1086 = vtanh.pop %v1079
    %v1087 = vmul.f32 %v1085, %v997
    %1089 = vrot.lane.b32.xlu0 %v1086, 64
    %v1090 = vpop.permute.xlu0 %1089
    %v1092 = vmul.f32 %v1085, %v1090
    %1094 = vrot.lane.b32.xlu0 %v1092, 32
    %v1095 = vpop.permute.xlu0 %1094
    %v1097 = vadd.f32 %v1087, %v1095
    %v1098 = vtanh.pop %v1097
    %1100 = vrot.lane.b32.xlu0 %v1098, 64
    %v1101 = vpop.permute.xlu0 %1100
    %v1103 = vmul.f32 %v1085, %v1101
    %v1104 = vld [vmem:[%s1] sm:$0xff]
    %v1105 = vld [vmem:[%s1 + $0x8] sm:$0xff]
    %vm1106 = vcmask 130048
    %v1108 = vsel %vm1106, %v1104, 0
    %v1111 = vsel %vm1106, %v1105, 0
    %1113 = vmatprep.subr.mxu0 0.0
    %1114 = vmatpush1.msra.mxu0 %v36
    %1115 = vmatprep.subr.mxu0 0.0
    %1116 = vmatpush1.msra.mxu0 %v37
    %1117 = vmatprep.subr.mxu0 0.0
    %1118 = vmatpush1.msra.mxu0 0.0
    %1119 = vmatprep.subr.mxu0 0.0
    %1120 = vmatpush1.msra.mxu0 0.0
    %1121 = vmatprep.subr.mxu0 0.0
    %1122 = vmatpush1.msra.mxu0 0.0
    %1123 = vmatprep.subr.mxu0 0.0
    %1124 = vmatpush1.msra.mxu0 0.0
    %1125 = vmatprep.subr.mxu0 0.0
    %1126 = vmatpush1.msra.mxu0 0.0
    %1127 = vmatprep.subr.mxu0 0.0
    %1128 = vmatpush1.msra.mxu0 0.0
    %1129 = vmatprep.subr.mxu0 0.0
    %1130 = vmatpush1.msra.mxu0 0.0
    %1131 = vmatprep.subr.mxu0 0.0
    %1132 = vmatpush1.msra.mxu0 0.0
    %1133 = vmatprep.subr.mxu0 0.0
    %1134 = vmatpush1.msra.mxu0 0.0
    %1135 = vmatprep.subr.mxu0 0.0
    %1136 = vmatpush1.msra.mxu0 0.0
    %1137 = vmatprep.subr.mxu0 0.0
    %1138 = vmatpush1.msra.mxu0 0.0
    %1139 = vmatprep.subr.mxu0 0.0
    %1140 = vmatpush1.msra.mxu0 0.0
    %1141 = vmatprep.subr.mxu0 0.0
    %1142 = vmatpush1.msra.mxu0 0.0
    %1143 = vmatprep.subr.mxu0 0.0
    %1144 = vmatpush1.msra.mxu0 0.0
    %1145 = vmatprep.subr.mxu0 0.0
    %1146 = vmatpush1.msra.mxu0 0.0
    %1147 = vmatprep.subr.mxu0 0.0
    %1148 = vmatpush1.msra.mxu0 0.0
    %1149 = vmatprep.subr.mxu0 0.0
    %1150 = vmatpush1.msra.mxu0 0.0
    %1151 = vmatprep.subr.mxu0 0.0
    %1152 = vmatpush1.msra.mxu0 0.0
    %1153 = vmatprep.subr.mxu0 0.0
    %1154 = vmatpush1.msra.mxu0 0.0
    %1155 = vmatprep.subr.mxu0 0.0
    %1156 = vmatpush1.msra.mxu0 0.0
    %1157 = vmatprep.subr.mxu0 0.0
    %1158 = vmatpush1.msra.mxu0 0.0
    %1159 = vmatprep.subr.mxu0 0.0
    %1160 = vmatpush1.msra.mxu0 0.0
    %1161 = vmatprep.subr.mxu0 0.0
    %1162 = vmatpush1.msra.mxu0 0.0
    %1163 = vmatprep.subr.mxu0 0.0
    %1164 = vmatpush1.msra.mxu0 0.0
    %1165 = vmatprep.subr.mxu0 0.0
    %1166 = vmatpush1.msra.mxu0 0.0
    %1167 = vmatprep.subr.mxu0 0.0
    %1168 = vmatpush1.msra.mxu0 0.0
    %1169 = vmatprep.subr.mxu0 0.0
    %1170 = vmatpush1.msra.mxu0 0.0
    %1171 = vmatprep.subr.mxu0 0.0
    %1172 = vmatpush1.msra.mxu0 0.0
    %1173 = vmatprep.subr.mxu0 0.0
    %1174 = vmatpush1.msra.mxu0 0.0
    %1175 = vmatprep.subr.mxu0 0.0
    %1176 = vmatpush1.msra.mxu0 0.0
    %1177 = vmatprep.mubr.f32.mxu0 0.0
    %1178 = vmatmul.mubr.f32.gmra.mrb[0].mxu0 %v1108
    %v1179 = vpop.f32.mrb[0].mxu0
    %v1180 = vadd.f32 0.0, %v1179
    %v1181 = vpop.f32.mrb[0].mxu0
    %1182 = vmatprep.mubr.f32.mxu0 0.0
    %1183 = vmatmul.mubr.f32.gmra.mrb[0].mxu0 %v1111
    %v1184 = vpop.f32.mrb[0].mxu0
    %v1185 = vadd.f32 0.0, %v1184
    %v1186 = vpop.f32.mrb[0].mxu0
    %1187 = vdwg.mxu0
    %1188 = vmatprep.subr.mxu0 0.0
    %1189 = vmatpush1.msra.mxu0 %v38
    %1190 = vmatprep.subr.mxu0 0.0
    %1191 = vmatpush1.msra.mxu0 %v39
    %1192 = vmatprep.subr.mxu0 0.0
    %1193 = vmatpush1.msra.mxu0 0.0
    %1194 = vmatprep.subr.mxu0 0.0
    %1195 = vmatpush1.msra.mxu0 0.0
    %1196 = vmatprep.subr.mxu0 0.0
    %1197 = vmatpush1.msra.mxu0 0.0
    %1198 = vmatprep.subr.mxu0 0.0
    %1199 = vmatpush1.msra.mxu0 0.0
    %1200 = vmatprep.subr.mxu0 0.0
    %1201 = vmatpush1.msra.mxu0 0.0
    %1202 = vmatprep.subr.mxu0 0.0
    %1203 = vmatpush1.msra.mxu0 0.0
    %1204 = vmatprep.subr.mxu0 0.0
    %1205 = vmatpush1.msra.mxu0 0.0
    %1206 = vmatprep.subr.mxu0 0.0
    %1207 = vmatpush1.msra.mxu0 0.0
    %1208 = vmatprep.subr.mxu0 0.0
    %1209 = vmatpush1.msra.mxu0 0.0
    %1210 = vmatprep.subr.mxu0 0.0
    %1211 = vmatpush1.msra.mxu0 0.0
    %1212 = vmatprep.subr.mxu0 0.0
    %1213 = vmatpush1.msra.mxu0 0.0
    %1214 = vmatprep.subr.mxu0 0.0
    %1215 = vmatpush1.msra.mxu0 0.0
    %1216 = vmatprep.subr.mxu0 0.0
    %1217 = vmatpush1.msra.mxu0 0.0
    %1218 = vmatprep.subr.mxu0 0.0
    %1219 = vmatpush1.msra.mxu0 0.0
    %1220 = vmatprep.subr.mxu0 0.0
    %1221 = vmatpush1.msra.mxu0 0.0
    %1222 = vmatprep.subr.mxu0 0.0
    %1223 = vmatpush1.msra.mxu0 0.0
    %1224 = vmatprep.subr.mxu0 0.0
    %1225 = vmatpush1.msra.mxu0 0.0
    %1226 = vmatprep.subr.mxu0 0.0
    %1227 = vmatpush1.msra.mxu0 0.0
    %1228 = vmatprep.subr.mxu0 0.0
    %1229 = vmatpush1.msra.mxu0 0.0
    %1230 = vmatprep.subr.mxu0 0.0
    %1231 = vmatpush1.msra.mxu0 0.0
    %1232 = vmatprep.subr.mxu0 0.0
    %1233 = vmatpush1.msra.mxu0 0.0
    %1234 = vmatprep.subr.mxu0 0.0
    %1235 = vmatpush1.msra.mxu0 0.0
    %1236 = vmatprep.subr.mxu0 0.0
    %1237 = vmatpush1.msra.mxu0 0.0
    %1238 = vmatprep.subr.mxu0 0.0
    %1239 = vmatpush1.msra.mxu0 0.0
    %1240 = vmatprep.subr.mxu0 0.0
    %1241 = vmatpush1.msra.mxu0 0.0
    %1242 = vmatprep.subr.mxu0 0.0
    %1243 = vmatpush1.msra.mxu0 0.0
    %1244 = vmatprep.subr.mxu0 0.0
    %1245 = vmatpush1.msra.mxu0 0.0
    %1246 = vmatprep.subr.mxu0 0.0
    %1247 = vmatpush1.msra.mxu0 0.0
    %1248 = vmatprep.subr.mxu0 0.0
    %1249 = vmatpush1.msra.mxu0 0.0
    %1250 = vmatprep.subr.mxu0 0.0
    %1251 = vmatpush1.msra.mxu0 0.0
    %1252 = vmatprep.mubr.f32.mxu0 0.0
    %1253 = vmatmul.mubr.f32.gmra.mrb[0].mxu0 %v1108
    %v1254 = vpop.f32.mrb[0].mxu0
    %v1255 = vadd.f32 0.0, %v1254
    %v1256 = vpop.f32.mrb[0].mxu0
    %1257 = vmatprep.mubr.f32.mxu0 0.0
    %1258 = vmatmul.mubr.f32.gmra.mrb[0].mxu0 %v1111
    %v1259 = vpop.f32.mrb[0].mxu0
    %v1260 = vadd.f32 0.0, %v1259
    %v1261 = vpop.f32.mrb[0].mxu0
    %1262 = vdwg.mxu0
    %v1263 = vlaneseq
    %v1264 = vshrl.u32 %v1263, 7
    %v1265 = vsub.s32 0, %v1264
    %v1266 = vrot.slane %v44, %v1265
    %1268 = vrot.lane.b32.xlu0 %v1103, 32
    %v1269 = vpop.permute.xlu0 %1268
    %v1270 = vsel %vm305, %v1269, 0
    %1272 = vmatprep.subr.mxu0 0.0
    %1273 = vmatpush1.msra.mxu0 %v40
    %1274 = vmatprep.subr.mxu0 0.0
    %1275 = vmatpush1.msra.mxu0 %v41
    %1276 = vmatprep.subr.mxu0 0.0
    %1277 = vmatpush1.msra.mxu0 %v42
    %1278 = vmatprep.subr.mxu0 0.0
    %1279 = vmatpush1.msra.mxu0 %v43
    %1280 = vmatprep.subr.mxu0 0.0
    %1281 = vmatpush1.msra.mxu0 0.0
    %1282 = vmatprep.subr.mxu0 0.0
    %1283 = vmatpush1.msra.mxu0 0.0
    %1284 = vmatprep.subr.mxu0 0.0
    %1285 = vmatpush1.msra.mxu0 0.0
    %1286 = vmatprep.subr.mxu0 0.0
    %1287 = vmatpush1.msra.mxu0 0.0
    %1288 = vmatprep.subr.mxu0 0.0
    %1289 = vmatpush1.msra.mxu0 0.0
    %1290 = vmatprep.subr.mxu0 0.0
    %1291 = vmatpush1.msra.mxu0 0.0
    %1292 = vmatprep.subr.mxu0 0.0
    %1293 = vmatpush1.msra.mxu0 0.0
    %1294 = vmatprep.subr.mxu0 0.0
    %1295 = vmatpush1.msra.mxu0 0.0
    %1296 = vmatprep.subr.mxu0 0.0
    %1297 = vmatpush1.msra.mxu0 0.0
    %1298 = vmatprep.subr.mxu0 0.0
    %1299 = vmatpush1.msra.mxu0 0.0
    %1300 = vmatprep.subr.mxu0 0.0
    %1301 = vmatpush1.msra.mxu0 0.0
    %1302 = vmatprep.subr.mxu0 0.0
    %1303 = vmatpush1.msra.mxu0 0.0
    %1304 = vmatprep.subr.mxu0 0.0
    %1305 = vmatpush1.msra.mxu0 0.0
    %1306 = vmatprep.subr.mxu0 0.0
    %1307 = vmatpush1.msra.mxu0 0.0
    %1308 = vmatprep.subr.mxu0 0.0
    %1309 = vmatpush1.msra.mxu0 0.0
    %1310 = vmatprep.subr.mxu0 0.0
    %1311 = vmatpush1.msra.mxu0 0.0
    %1312 = vmatprep.subr.mxu0 0.0
    %1313 = vmatpush1.msra.mxu0 0.0
    %1314 = vmatprep.subr.mxu0 0.0
    %1315 = vmatpush1.msra.mxu0 0.0
    %1316 = vmatprep.subr.mxu0 0.0
    %1317 = vmatpush1.msra.mxu0 0.0
    %1318 = vmatprep.subr.mxu0 0.0
    %1319 = vmatpush1.msra.mxu0 0.0
    %1320 = vmatprep.subr.mxu0 0.0
    %1321 = vmatpush1.msra.mxu0 0.0
    %1322 = vmatprep.subr.mxu0 0.0
    %1323 = vmatpush1.msra.mxu0 0.0
    %1324 = vmatprep.subr.mxu0 0.0
    %1325 = vmatpush1.msra.mxu0 0.0
    %1326 = vmatprep.subr.mxu0 0.0
    %1327 = vmatpush1.msra.mxu0 0.0
    %1328 = vmatprep.subr.mxu0 0.0
    %1329 = vmatpush1.msra.mxu0 0.0
    %1330 = vmatprep.subr.mxu0 0.0
    %1331 = vmatpush1.msra.mxu0 0.0
    %1332 = vmatprep.subr.mxu0 0.0
    %1333 = vmatpush1.msra.mxu0 0.0
    %1334 = vmatprep.subr.mxu0 0.0
    %1335 = vmatpush1.msra.mxu0 0.0
    %1336 = vmatprep.mubr.f32.mxu0 0.0
    %1337 = vmatmul.mubr.f32.gmra.mrb[0].mxu0 %v1270
    %v1338 = vpop.f32.mrb[0].mxu0
    %v1339 = vadd.f32 %v1266, %v1338
    %v1340 = vpop.f32.mrb[0].mxu0
    %1341 = vdwg.mxu0
    %v1342 = vlaneseq
    %v1343 = vshrl.u32 %v1342, 7
    %v1344 = vadd.s32 %v1343, 8
    %v1345 = vadd.s32 %v1343, 16
    %v1346 = vadd.s32 %v1343, 24
    %v1347 = vadd.s32 %v1343, 32
    %v1348 = vadd.s32 %v1343, 40
    %v1349 = vadd.s32 %v1343, 48
    %v1350 = vadd.s32 %v1343, 56
    %v1351 = vadd.s32 %v1343, 64
    %v1352 = vadd.s32 %v1343, 72
    %v1353 = vadd.s32 %v1343, 80
    %v1354 = vadd.s32 %v1343, 88
    %v1355 = vadd.s32 %v1343, 96
    %v1356 = vadd.s32 %v1343, 104
    %v1357 = vadd.s32 %v1343, 112
    %v1358 = vadd.s32 %v1343, 120
    %v1359 = vshra.s32 %v1343, 6
    %v1360 = vshra.s32 %v1344, 6
    %v1361 = vshra.s32 %v1345, 6
    %v1362 = vshra.s32 %v1346, 6
    %v1363 = vshra.s32 %v1347, 6
    %v1364 = vshra.s32 %v1348, 6
    %v1365 = vshra.s32 %v1349, 6
    %v1366 = vshra.s32 %v1350, 6
    %v1367 = vshra.s32 %v1351, 6
    %v1368 = vshra.s32 %v1352, 6
    %v1369 = vshra.s32 %v1353, 6
    %v1370 = vshra.s32 %v1354, 6
    %v1371 = vshra.s32 %v1355, 6
    %v1372 = vshra.s32 %v1356, 6
    %v1373 = vshra.s32 %v1357, 6
    %v1374 = vshra.s32 %v1358, 6
    %v1375 = vshra.s32 %v1343, 3
    %v1376 = vshra.s32 %v1344, 3
    %v1377 = vshra.s32 %v1345, 3
    %v1378 = vshra.s32 %v1346, 3
    %v1379 = vshra.s32 %v1347, 3
    %v1380 = vshra.s32 %v1348, 3
    %v1381 = vshra.s32 %v1349, 3
    %v1382 = vshra.s32 %v1350, 3
    %v1383 = vshra.s32 %v1351, 3
    %v1384 = vshra.s32 %v1352, 3
    %v1385 = vshra.s32 %v1353, 3
    %v1386 = vshra.s32 %v1354, 3
    %v1387 = vshra.s32 %v1355, 3
    %v1388 = vshra.s32 %v1356, 3
    %v1389 = vshra.s32 %v1357, 3
    %v1390 = vshra.s32 %v1358, 3
    %v1391 = vand.u32 %v1375, 7
    %v1392 = vand.u32 %v1376, 7
    %v1393 = vand.u32 %v1377, 7
    %v1394 = vand.u32 %v1378, 7
    %v1395 = vand.u32 %v1379, 7
    %v1396 = vand.u32 %v1380, 7
    %v1397 = vand.u32 %v1381, 7
    %v1398 = vand.u32 %v1382, 7
    %v1399 = vand.u32 %v1383, 7
    %v1400 = vand.u32 %v1384, 7
    %v1401 = vand.u32 %v1385, 7
    %v1402 = vand.u32 %v1386, 7
    %v1403 = vand.u32 %v1387, 7
    %v1404 = vand.u32 %v1388, 7
    %v1405 = vand.u32 %v1389, 7
    %v1406 = vand.u32 %v1390, 7
    %v1407 = vand.u32 %v1343, 7
    %v1408 = vand.u32 %v1344, 7
    %v1409 = vand.u32 %v1345, 7
    %v1410 = vand.u32 %v1346, 7
    %v1411 = vand.u32 %v1347, 7
    %v1412 = vand.u32 %v1348, 7
    %v1413 = vand.u32 %v1349, 7
    %v1414 = vand.u32 %v1350, 7
    %v1415 = vand.u32 %v1351, 7
    %v1416 = vand.u32 %v1352, 7
    %v1417 = vand.u32 %v1353, 7
    %v1418 = vand.u32 %v1354, 7
    %v1419 = vand.u32 %v1355, 7
    %v1420 = vand.u32 %v1356, 7
    %v1421 = vand.u32 %v1357, 7
    %v1422 = vand.u32 %v1358, 7
    %v1423 = vmul.u32 %v1359, 8
    %v1424 = vmul.u32 %v1360, 8
    %v1425 = vmul.u32 %v1361, 8
    %v1426 = vmul.u32 %v1362, 8
    %v1427 = vmul.u32 %v1363, 8
    %v1428 = vmul.u32 %v1364, 8
    %v1429 = vmul.u32 %v1365, 8
    %v1430 = vmul.u32 %v1366, 8
    %v1431 = vmul.u32 %v1367, 8
    %v1432 = vmul.u32 %v1368, 8
    %v1433 = vmul.u32 %v1369, 8
    %v1434 = vmul.u32 %v1370, 8
    %v1435 = vmul.u32 %v1371, 8
    %v1436 = vmul.u32 %v1372, 8
    %v1437 = vmul.u32 %v1373, 8
    %v1438 = vmul.u32 %v1374, 8
    %v1439 = vadd.s32 %v1423, %v1407
    %v1440 = vadd.s32 %v1424, %v1408
    %v1441 = vadd.s32 %v1425, %v1409
    %v1442 = vadd.s32 %v1426, %v1410
    %v1443 = vadd.s32 %v1427, %v1411
    %v1444 = vadd.s32 %v1428, %v1412
    %v1445 = vadd.s32 %v1429, %v1413
    %v1446 = vadd.s32 %v1430, %v1414
    %v1447 = vadd.s32 %v1431, %v1415
    %v1448 = vadd.s32 %v1432, %v1416
    %v1449 = vadd.s32 %v1433, %v1417
    %v1450 = vadd.s32 %v1434, %v1418
    %v1451 = vadd.s32 %v1435, %v1419
    %v1452 = vadd.s32 %v1436, %v1420
    %v1453 = vadd.s32 %v1437, %v1421
    %v1454 = vadd.s32 %v1438, %v1422
    %vm1455 = vcmp.eq.s32.totalorder %v122, %v1439
    %vm1456 = vcmp.eq.s32.totalorder %v122, %v1440
    %vm1457 = vcmp.eq.s32.totalorder %v122, %v1441
    %vm1458 = vcmp.eq.s32.totalorder %v122, %v1442
    %vm1459 = vcmp.eq.s32.totalorder %v122, %v1443
    %vm1460 = vcmp.eq.s32.totalorder %v122, %v1444
    %vm1461 = vcmp.eq.s32.totalorder %v122, %v1445
    %vm1462 = vcmp.eq.s32.totalorder %v122, %v1446
    %vm1463 = vcmp.eq.s32.totalorder %v122, %v1447
    %vm1464 = vcmp.eq.s32.totalorder %v122, %v1448
    %vm1465 = vcmp.eq.s32.totalorder %v122, %v1449
    %vm1466 = vcmp.eq.s32.totalorder %v122, %v1450
    %vm1467 = vcmp.eq.s32.totalorder %v122, %v1451
    %vm1468 = vcmp.eq.s32.totalorder %v122, %v1452
    %vm1469 = vcmp.eq.s32.totalorder %v122, %v1453
    %vm1470 = vcmp.eq.s32.totalorder %v122, %v1454
    %v1471 = vsel %vm1455, 1, 0
    %v1472 = vsel %vm1456, 1, 0
    %v1473 = vsel %vm1457, 1, 0
    %v1474 = vsel %vm1458, 1, 0
    %v1475 = vsel %vm1459, 1, 0
    %v1476 = vsel %vm1460, 1, 0
    %v1477 = vsel %vm1461, 1, 0
    %v1478 = vsel %vm1462, 1, 0
    %v1479 = vsel %vm1463, 1, 0
    %v1480 = vsel %vm1464, 1, 0
    %v1481 = vsel %vm1465, 1, 0
    %v1482 = vsel %vm1466, 1, 0
    %v1483 = vsel %vm1467, 1, 0
    %v1484 = vsel %vm1468, 1, 0
    %v1485 = vsel %vm1469, 1, 0
    %v1486 = vsel %vm1470, 1, 0
    %v1487 = vcvt.s32.f32 %v1471
    %v1488 = vcvt.s32.f32 %v1472
    %v1489 = vcvt.s32.f32 %v1473
    %v1490 = vcvt.s32.f32 %v1474
    %v1491 = vcvt.s32.f32 %v1475
    %v1492 = vcvt.s32.f32 %v1476
    %v1493 = vcvt.s32.f32 %v1477
    %v1494 = vcvt.s32.f32 %v1478
    %v1495 = vcvt.s32.f32 %v1479
    %v1496 = vcvt.s32.f32 %v1480
    %v1497 = vcvt.s32.f32 %v1481
    %v1498 = vcvt.s32.f32 %v1482
    %v1499 = vcvt.s32.f32 %v1483
    %v1500 = vcvt.s32.f32 %v1484
    %v1501 = vcvt.s32.f32 %v1485
    %v1502 = vcvt.s32.f32 %v1486
    %v1503 = vadd.s32 %v1423, %v1391
    %v1504 = vadd.s32 %v1424, %v1392
    %v1505 = vadd.s32 %v1425, %v1393
    %v1506 = vadd.s32 %v1426, %v1394
    %v1507 = vadd.s32 %v1427, %v1395
    %v1508 = vadd.s32 %v1428, %v1396
    %v1509 = vadd.s32 %v1429, %v1397
    %v1510 = vadd.s32 %v1430, %v1398
    %v1511 = vadd.s32 %v1431, %v1399
    %v1512 = vadd.s32 %v1432, %v1400
    %v1513 = vadd.s32 %v1433, %v1401
    %v1514 = vadd.s32 %v1434, %v1402
    %v1515 = vadd.s32 %v1435, %v1403
    %v1516 = vadd.s32 %v1436, %v1404
    %v1517 = vadd.s32 %v1437, %v1405
    %v1518 = vadd.s32 %v1438, %v1406
    %vm1519 = vcmp.eq.s32.totalorder %v122, %v1503
    %vm1520 = vcmp.eq.s32.totalorder %v122, %v1504
    %vm1521 = vcmp.eq.s32.totalorder %v122, %v1505
    %vm1522 = vcmp.eq.s32.totalorder %v122, %v1506
    %vm1523 = vcmp.eq.s32.totalorder %v122, %v1507
    %vm1524 = vcmp.eq.s32.totalorder %v122, %v1508
    %vm1525 = vcmp.eq.s32.totalorder %v122, %v1509
    %vm1526 = vcmp.eq.s32.totalorder %v122, %v1510
    %vm1527 = vcmp.eq.s32.totalorder %v122, %v1511
    %vm1528 = vcmp.eq.s32.totalorder %v122, %v1512
    %vm1529 = vcmp.eq.s32.totalorder %v122, %v1513
    %vm1530 = vcmp.eq.s32.totalorder %v122, %v1514
    %vm1531 = vcmp.eq.s32.totalorder %v122, %v1515
    %vm1532 = vcmp.eq.s32.totalorder %v122, %v1516
    %vm1533 = vcmp.eq.s32.totalorder %v122, %v1517
    %vm1534 = vcmp.eq.s32.totalorder %v122, %v1518
    %v1535 = vsel %vm1519, 1, 0
    %v1536 = vsel %vm1520, 1, 0
    %v1537 = vsel %vm1521, 1, 0
    %v1538 = vsel %vm1522, 1, 0
    %v1539 = vsel %vm1523, 1, 0
    %v1540 = vsel %vm1524, 1, 0
    %v1541 = vsel %vm1525, 1, 0
    %v1542 = vsel %vm1526, 1, 0
    %v1543 = vsel %vm1527, 1, 0
    %v1544 = vsel %vm1528, 1, 0
    %v1545 = vsel %vm1529, 1, 0
    %v1546 = vsel %vm1530, 1, 0
    %v1547 = vsel %vm1531, 1, 0
    %v1548 = vsel %vm1532, 1, 0
    %v1549 = vsel %vm1533, 1, 0
    %v1550 = vsel %vm1534, 1, 0
    %v1551 = vcvt.s32.f32 %v1535
    %v1552 = vcvt.s32.f32 %v1536
    %v1553 = vcvt.s32.f32 %v1537
    %v1554 = vcvt.s32.f32 %v1538
    %v1555 = vcvt.s32.f32 %v1539
    %v1556 = vcvt.s32.f32 %v1540
    %v1557 = vcvt.s32.f32 %v1541
    %v1558 = vcvt.s32.f32 %v1542
    %v1559 = vcvt.s32.f32 %v1543
    %v1560 = vcvt.s32.f32 %v1544
    %v1561 = vcvt.s32.f32 %v1545
    %v1562 = vcvt.s32.f32 %v1546
    %v1563 = vcvt.s32.f32 %v1547
    %v1564 = vcvt.s32.f32 %v1548
    %v1565 = vcvt.s32.f32 %v1549
    %v1566 = vcvt.s32.f32 %v1550
    %vm1567 = vcmp.eq.s32.totalorder %v122, %v1359
    %vm1568 = vcmp.eq.s32.totalorder %v122, %v1360
    %vm1569 = vcmp.eq.s32.totalorder %v122, %v1361
    %vm1570 = vcmp.eq.s32.totalorder %v122, %v1362
    %vm1571 = vcmp.eq.s32.totalorder %v122, %v1363
    %vm1572 = vcmp.eq.s32.totalorder %v122, %v1364
    %vm1573 = vcmp.eq.s32.totalorder %v122, %v1365
    %vm1574 = vcmp.eq.s32.totalorder %v122, %v1366
    %vm1575 = vcmp.eq.s32.totalorder %v122, %v1367
    %vm1576 = vcmp.eq.s32.totalorder %v122, %v1368
    %vm1577 = vcmp.eq.s32.totalorder %v122, %v1369
    %vm1578 = vcmp.eq.s32.totalorder %v122, %v1370
    %vm1579 = vcmp.eq.s32.totalorder %v122, %v1371
    %vm1580 = vcmp.eq.s32.totalorder %v122, %v1372
    %vm1581 = vcmp.eq.s32.totalorder %v122, %v1373
    %vm1582 = vcmp.eq.s32.totalorder %v122, %v1374
    %v1583 = vsel %vm1567, 1, 0
    %v1584 = vsel %vm1568, 1, 0
    %v1585 = vsel %vm1569, 1, 0
    %v1586 = vsel %vm1570, 1, 0
    %v1587 = vsel %vm1571, 1, 0
    %v1588 = vsel %vm1572, 1, 0
    %v1589 = vsel %vm1573, 1, 0
    %v1590 = vsel %vm1574, 1, 0
    %v1591 = vsel %vm1575, 1, 0
    %v1592 = vsel %vm1576, 1, 0
    %v1593 = vsel %vm1577, 1, 0
    %v1594 = vsel %vm1578, 1, 0
    %v1595 = vsel %vm1579, 1, 0
    %v1596 = vsel %vm1580, 1, 0
    %v1597 = vsel %vm1581, 1, 0
    %v1598 = vsel %vm1582, 1, 0
    %v1599 = vcvt.s32.f32 %v1583
    %v1600 = vcvt.s32.f32 %v1584
    %v1601 = vcvt.s32.f32 %v1585
    %v1602 = vcvt.s32.f32 %v1586
    %v1603 = vcvt.s32.f32 %v1587
    %v1604 = vcvt.s32.f32 %v1588
    %v1605 = vcvt.s32.f32 %v1589
    %v1606 = vcvt.s32.f32 %v1590
    %v1607 = vcvt.s32.f32 %v1591
    %v1608 = vcvt.s32.f32 %v1592
    %v1609 = vcvt.s32.f32 %v1593
    %v1610 = vcvt.s32.f32 %v1594
    %v1611 = vcvt.s32.f32 %v1595
    %v1612 = vcvt.s32.f32 %v1596
    %v1613 = vcvt.s32.f32 %v1597
    %v1614 = vcvt.s32.f32 %v1598
    %v1616 = vsel %vm1106, %v1551, 0
    %v1619 = vsel %vm1106, %v1552, 0
    %v1622 = vsel %vm1106, %v1553, 0
    %v1625 = vsel %vm1106, %v1554, 0
    %v1628 = vsel %vm1106, %v1555, 0
    %v1631 = vsel %vm1106, %v1556, 0
    %v1634 = vsel %vm1106, %v1557, 0
    %v1637 = vsel %vm1106, %v1558, 0
    %v1640 = vsel %vm1106, %v1559, 0
    %v1643 = vsel %vm1106, %v1560, 0
    %v1646 = vsel %vm1106, %v1561, 0
    %v1649 = vsel %vm1106, %v1562, 0
    %v1652 = vsel %vm1106, %v1563, 0
    %v1655 = vsel %vm1106, %v1564, 0
    %v1658 = vsel %vm1106, %v1565, 0
    %v1661 = vsel %vm1106, %v1566, 0
    %1663 = vmatprep.subr.mxu0 0.0
    %1664 = vmatpush1.msra.mxu0 %v1255
    %1665 = vmatprep.subr.mxu0 0.0
    %1666 = vmatpush1.msra.mxu0 %v1260
    %1667 = vmatprep.subr.mxu0 0.0
    %1668 = vmatpush1.msra.mxu0 0.0
    %1669 = vmatprep.subr.mxu0 0.0
    %1670 = vmatpush1.msra.mxu0 0.0
    %1671 = vmatprep.subr.mxu0 0.0
    %1672 = vmatpush1.msra.mxu0 0.0
    %1673 = vmatprep.subr.mxu0 0.0
    %1674 = vmatpush1.msra.mxu0 0.0
    %1675 = vmatprep.subr.mxu0 0.0
    %1676 = vmatpush1.msra.mxu0 0.0
    %1677 = vmatprep.subr.mxu0 0.0
    %1678 = vmatpush1.msra.mxu0 0.0
    %1679 = vmatprep.subr.mxu0 0.0
    %1680 = vmatpush1.msra.mxu0 0.0
    %1681 = vmatprep.subr.mxu0 0.0
    %1682 = vmatpush1.msra.mxu0 0.0
    %1683 = vmatprep.subr.mxu0 0.0
    %1684 = vmatpush1.msra.mxu0 0.0
    %1685 = vmatprep.subr.mxu0 0.0
    %1686 = vmatpush1.msra.mxu0 0.0
    %1687 = vmatprep.subr.mxu0 0.0
    %1688 = vmatpush1.msra.mxu0 0.0
    %1689 = vmatprep.subr.mxu0 0.0
    %1690 = vmatpush1.msra.mxu0 0.0
    %1691 = vmatprep.subr.mxu0 0.0
    %1692 = vmatpush1.msra.mxu0 0.0
    %1693 = vmatprep.subr.mxu0 0.0
    %1694 = vmatpush1.msra.mxu0 0.0
    %1695 = vmatprep.subr.mxu0 0.0
    %1696 = vmatpush1.msra.mxu0 0.0
    %1697 = vmatprep.subr.mxu0 0.0
    %1698 = vmatpush1.msra.mxu0 0.0
    %1699 = vmatprep.subr.mxu0 0.0
    %1700 = vmatpush1.msra.mxu0 0.0
    %1701 = vmatprep.subr.mxu0 0.0
    %1702 = vmatpush1.msra.mxu0 0.0
    %1703 = vmatprep.subr.mxu0 0.0
    %1704 = vmatpush1.msra.mxu0 0.0
    %1705 = vmatprep.subr.mxu0 0.0
    %1706 = vmatpush1.msra.mxu0 0.0
    %1707 = vmatprep.subr.mxu0 0.0
    %1708 = vmatpush1.msra.mxu0 0.0
    %1709 = vmatprep.subr.mxu0 0.0
    %1710 = vmatpush1.msra.mxu0 0.0
    %1711 = vmatprep.subr.mxu0 0.0
    %1712 = vmatpush1.msra.mxu0 0.0
    %1713 = vmatprep.subr.mxu0 0.0
    %1714 = vmatpush1.msra.mxu0 0.0
    %1715 = vmatprep.subr.mxu0 0.0
    %1716 = vmatpush1.msra.mxu0 0.0
    %1717 = vmatprep.subr.mxu0 0.0
    %1718 = vmatpush1.msra.mxu0 0.0
    %1719 = vmatprep.subr.mxu0 0.0
    %1720 = vmatpush1.msra.mxu0 0.0
    %1721 = vmatprep.subr.mxu0 0.0
    %1722 = vmatpush1.msra.mxu0 0.0
    %1723 = vmatprep.subr.mxu0 0.0
    %1724 = vmatpush1.msra.mxu0 0.0
    %1725 = vmatprep.subr.mxu0 0.0
    %1726 = vmatpush1.msra.mxu0 0.0
    %1727 = vmatprep.mubr.f32.mxu0 0.0
    %1728 = vmatmul.mubr.f32.gmra.mrb[0].mxu0 %v1616
    %v1729 = vpop.f32.mrb[0].mxu0
    %v1730 = vadd.f32 0.0, %v1729
    %v1731 = vpop.f32.mrb[0].mxu0
    %1732 = vmatprep.mubr.f32.mxu0 0.0
    %1733 = vmatmul.mubr.f32.gmra.mrb[0].mxu0 %v1619
    %v1734 = vpop.f32.mrb[0].mxu0
    %v1735 = vadd.f32 0.0, %v1734
    %v1736 = vpop.f32.mrb[0].mxu0
    %1737 = vmatprep.mubr.f32.mxu0 0.0
    %1738 = vmatmul.mubr.f32.gmra.mrb[0].mxu0 %v1622
    %v1739 = vpop.f32.mrb[0].mxu0
    %v1740 = vadd.f32 0.0, %v1739
    %v1741 = vpop.f32.mrb[0].mxu0
    %1742 = vmatprep.mubr.f32.mxu0 0.0
    %1743 = vmatmul.mubr.f32.gmra.mrb[0].mxu0 %v1625
    %v1744 = vpop.f32.mrb[0].mxu0
    %v1745 = vadd.f32 0.0, %v1744
    %v1746 = vpop.f32.mrb[0].mxu0
    %1747 = vmatprep.mubr.f32.mxu0 0.0
    %1748 = vmatmul.mubr.f32.gmra.mrb[0].mxu0 %v1628
    %v1749 = vpop.f32.mrb[0].mxu0
    %v1750 = vadd.f32 0.0, %v1749
    %v1751 = vpop.f32.mrb[0].mxu0
    %1752 = vmatprep.mubr.f32.mxu0 0.0
    %1753 = vmatmul.mubr.f32.gmra.mrb[0].mxu0 %v1631
    %v1754 = vpop.f32.mrb[0].mxu0
    %v1755 = vadd.f32 0.0, %v1754
    %v1756 = vpop.f32.mrb[0].mxu0
    %1757 = vmatprep.mubr.f32.mxu0 0.0
    %1758 = vmatmul.mubr.f32.gmra.mrb[0].mxu0 %v1634
    %v1759 = vpop.f32.mrb[0].mxu0
    %v1760 = vadd.f32 0.0, %v1759
    %v1761 = vpop.f32.mrb[0].mxu0
    %1762 = vmatprep.mubr.f32.mxu0 0.0
    %1763 = vmatmul.mubr.f32.gmra.mrb[0].mxu0 %v1637
    %v1764 = vpop.f32.mrb[0].mxu0
    %v1765 = vadd.f32 0.0, %v1764
    %v1766 = vpop.f32.mrb[0].mxu0
    %1767 = vmatprep.mubr.f32.mxu0 0.0
    %1768 = vmatmul.mubr.f32.gmra.mrb[0].mxu0 %v1640
    %v1769 = vpop.f32.mrb[0].mxu0
    %v1770 = vadd.f32 0.0, %v1769
    %v1771 = vpop.f32.mrb[0].mxu0
    %1772 = vmatprep.mubr.f32.mxu0 0.0
    %1773 = vmatmul.mubr.f32.gmra.mrb[0].mxu0 %v1643
    %v1774 = vpop.f32.mrb[0].mxu0
    %v1775 = vadd.f32 0.0, %v1774
    %v1776 = vpop.f32.mrb[0].mxu0
    %1777 = vmatprep.mubr.f32.mxu0 0.0
    %1778 = vmatmul.mubr.f32.gmra.mrb[0].mxu0 %v1646
    %v1779 = vpop.f32.mrb[0].mxu0
    %v1780 = vadd.f32 0.0, %v1779
    %v1781 = vpop.f32.mrb[0].mxu0
    %1782 = vmatprep.mubr.f32.mxu0 0.0
    %1783 = vmatmul.mubr.f32.gmra.mrb[0].mxu0 %v1649
    %v1784 = vpop.f32.mrb[0].mxu0
    %v1785 = vadd.f32 0.0, %v1784
    %v1786 = vpop.f32.mrb[0].mxu0
    %1787 = vmatprep.mubr.f32.mxu0 0.0
    %1788 = vmatmul.mubr.f32.gmra.mrb[0].mxu0 %v1652
    %v1789 = vpop.f32.mrb[0].mxu0
    %v1790 = vadd.f32 0.0, %v1789
    %v1791 = vpop.f32.mrb[0].mxu0
    %1792 = vmatprep.mubr.f32.mxu0 0.0
    %1793 = vmatmul.mubr.f32.gmra.mrb[0].mxu0 %v1655
    %v1794 = vpop.f32.mrb[0].mxu0
    %v1795 = vadd.f32 0.0, %v1794
    %v1796 = vpop.f32.mrb[0].mxu0
    %1797 = vmatprep.mubr.f32.mxu0 0.0
    %1798 = vmatmul.mubr.f32.gmra.mrb[0].mxu0 %v1658
    %v1799 = vpop.f32.mrb[0].mxu0
    %v1800 = vadd.f32 0.0, %v1799
    %v1801 = vpop.f32.mrb[0].mxu0
    %1802 = vmatprep.mubr.f32.mxu0 0.0
    %1803 = vmatmul.mubr.f32.gmra.mrb[0].mxu0 %v1661
    %v1804 = vpop.f32.mrb[0].mxu0
    %v1805 = vadd.f32 0.0, %v1804
    %v1806 = vpop.f32.mrb[0].mxu0
    %1807 = vdwg.mxu0
    %v1809 = vsel %vm1106, %v1487, 0
    %v1812 = vsel %vm1106, %v1488, 0
    %v1815 = vsel %vm1106, %v1489, 0
    %v1818 = vsel %vm1106, %v1490, 0
    %v1821 = vsel %vm1106, %v1491, 0
    %v1824 = vsel %vm1106, %v1492, 0
    %v1827 = vsel %vm1106, %v1493, 0
    %v1830 = vsel %vm1106, %v1494, 0
    %v1833 = vsel %vm1106, %v1495, 0
    %v1836 = vsel %vm1106, %v1496, 0
    %v1839 = vsel %vm1106, %v1497, 0
    %v1842 = vsel %vm1106, %v1498, 0
    %v1845 = vsel %vm1106, %v1499, 0
    %v1848 = vsel %vm1106, %v1500, 0
    %v1851 = vsel %vm1106, %v1501, 0
    %v1854 = vsel %vm1106, %v1502, 0
    %1856 = vmatprep.subr.mxu0 0.0
    %1857 = vmatpush1.msra.mxu0 %v1180
    %1858 = vmatprep.subr.mxu0 0.0
    %1859 = vmatpush1.msra.mxu0 %v1185
    %1860 = vmatprep.subr.mxu0 0.0
    %1861 = vmatpush1.msra.mxu0 0.0
    %1862 = vmatprep.subr.mxu0 0.0
    %1863 = vmatpush1.msra.mxu0 0.0
    %1864 = vmatprep.subr.mxu0 0.0
    %1865 = vmatpush1.msra.mxu0 0.0
    %1866 = vmatprep.subr.mxu0 0.0
    %1867 = vmatpush1.msra.mxu0 0.0
    %1868 = vmatprep.subr.mxu0 0.0
    %1869 = vmatpush1.msra.mxu0 0.0
    %1870 = vmatprep.subr.mxu0 0.0
    %1871 = vmatpush1.msra.mxu0 0.0
    %1872 = vmatprep.subr.mxu0 0.0
    %1873 = vmatpush1.msra.mxu0 0.0
    %1874 = vmatprep.subr.mxu0 0.0
    %1875 = vmatpush1.msra.mxu0 0.0
    %1876 = vmatprep.subr.mxu0 0.0
    %1877 = vmatpush1.msra.mxu0 0.0
    %1878 = vmatprep.subr.mxu0 0.0
    %1879 = vmatpush1.msra.mxu0 0.0
    %1880 = vmatprep.subr.mxu0 0.0
    %1881 = vmatpush1.msra.mxu0 0.0
    %1882 = vmatprep.subr.mxu0 0.0
    %1883 = vmatpush1.msra.mxu0 0.0
    %1884 = vmatprep.subr.mxu0 0.0
    %1885 = vmatpush1.msra.mxu0 0.0
    %1886 = vmatprep.subr.mxu0 0.0
    %1887 = vmatpush1.msra.mxu0 0.0
    %1888 = vmatprep.subr.mxu0 0.0
    %1889 = vmatpush1.msra.mxu0 0.0
    %1890 = vmatprep.subr.mxu0 0.0
    %1891 = vmatpush1.msra.mxu0 0.0
    %1892 = vmatprep.subr.mxu0 0.0
    %1893 = vmatpush1.msra.mxu0 0.0
    %1894 = vmatprep.subr.mxu0 0.0
    %1895 = vmatpush1.msra.mxu0 0.0
    %1896 = vmatprep.subr.mxu0 0.0
    %1897 = vmatpush1.msra.mxu0 0.0
    %1898 = vmatprep.subr.mxu0 0.0
    %1899 = vmatpush1.msra.mxu0 0.0
    %1900 = vmatprep.subr.mxu0 0.0
    %1901 = vmatpush1.msra.mxu0 0.0
    %1902 = vmatprep.subr.mxu0 0.0
    %1903 = vmatpush1.msra.mxu0 0.0
    %1904 = vmatprep.subr.mxu0 0.0
    %1905 = vmatpush1.msra.mxu0 0.0
    %1906 = vmatprep.subr.mxu0 0.0
    %1907 = vmatpush1.msra.mxu0 0.0
    %1908 = vmatprep.subr.mxu0 0.0
    %1909 = vmatpush1.msra.mxu0 0.0
    %1910 = vmatprep.subr.mxu0 0.0
    %1911 = vmatpush1.msra.mxu0 0.0
    %1912 = vmatprep.subr.mxu0 0.0
    %1913 = vmatpush1.msra.mxu0 0.0
    %1914 = vmatprep.subr.mxu0 0.0
    %1915 = vmatpush1.msra.mxu0 0.0
    %1916 = vmatprep.subr.mxu0 0.0
    %1917 = vmatpush1.msra.mxu0 0.0
    %1918 = vmatprep.subr.mxu0 0.0
    %1919 = vmatpush1.msra.mxu0 0.0
    %1920 = vmatprep.mubr.f32.mxu0 0.0
    %1921 = vmatmul.mubr.f32.gmra.mrb[0].mxu0 %v1809
    %v1922 = vpop.f32.mrb[0].mxu0
    %v1923 = vadd.f32 %v1730, %v1922
    %v1924 = vpop.f32.mrb[0].mxu0
    %1925 = vmatprep.mubr.f32.mxu0 0.0
    %1926 = vmatmul.mubr.f32.gmra.mrb[0].mxu0 %v1812
    %v1927 = vpop.f32.mrb[0].mxu0
    %v1928 = vadd.f32 %v1735, %v1927
    %v1929 = vpop.f32.mrb[0].mxu0
    %1930 = vmatprep.mubr.f32.mxu0 0.0
    %1931 = vmatmul.mubr.f32.gmra.mrb[0].mxu0 %v1815
    %v1932 = vpop.f32.mrb[0].mxu0
    %v1933 = vadd.f32 %v1740, %v1932
    %v1934 = vpop.f32.mrb[0].mxu0
    %1935 = vmatprep.mubr.f32.mxu0 0.0
    %1936 = vmatmul.mubr.f32.gmra.mrb[0].mxu0 %v1818
    %v1937 = vpop.f32.mrb[0].mxu0
    %v1938 = vadd.f32 %v1745, %v1937
    %v1939 = vpop.f32.mrb[0].mxu0
    %1940 = vmatprep.mubr.f32.mxu0 0.0
    %1941 = vmatmul.mubr.f32.gmra.mrb[0].mxu0 %v1821
    %v1942 = vpop.f32.mrb[0].mxu0
    %v1943 = vadd.f32 %v1750, %v1942
    %v1944 = vpop.f32.mrb[0].mxu0
    %1945 = vmatprep.mubr.f32.mxu0 0.0
    %1946 = vmatmul.mubr.f32.gmra.mrb[0].mxu0 %v1824
    %v1947 = vpop.f32.mrb[0].mxu0
    %v1948 = vadd.f32 %v1755, %v1947
    %v1949 = vpop.f32.mrb[0].mxu0
    %1950 = vmatprep.mubr.f32.mxu0 0.0
    %1951 = vmatmul.mubr.f32.gmra.mrb[0].mxu0 %v1827
    %v1952 = vpop.f32.mrb[0].mxu0
    %v1953 = vadd.f32 %v1760, %v1952
    %v1954 = vpop.f32.mrb[0].mxu0
    %1955 = vmatprep.mubr.f32.mxu0 0.0
    %1956 = vmatmul.mubr.f32.gmra.mrb[0].mxu0 %v1830
    %v1957 = vpop.f32.mrb[0].mxu0
    %v1958 = vadd.f32 %v1765, %v1957
    %v1959 = vpop.f32.mrb[0].mxu0
    %1960 = vmatprep.mubr.f32.mxu0 0.0
    %1961 = vmatmul.mubr.f32.gmra.mrb[0].mxu0 %v1833
    %v1962 = vpop.f32.mrb[0].mxu0
    %v1963 = vadd.f32 %v1770, %v1962
    %v1964 = vpop.f32.mrb[0].mxu0
    %1965 = vmatprep.mubr.f32.mxu0 0.0
    %1966 = vmatmul.mubr.f32.gmra.mrb[0].mxu0 %v1836
    %v1967 = vpop.f32.mrb[0].mxu0
    %v1968 = vadd.f32 %v1775, %v1967
    %v1969 = vpop.f32.mrb[0].mxu0
    %1970 = vmatprep.mubr.f32.mxu0 0.0
    %1971 = vmatmul.mubr.f32.gmra.mrb[0].mxu0 %v1839
    %v1972 = vpop.f32.mrb[0].mxu0
    %v1973 = vadd.f32 %v1780, %v1972
    %v1974 = vpop.f32.mrb[0].mxu0
    %1975 = vmatprep.mubr.f32.mxu0 0.0
    %1976 = vmatmul.mubr.f32.gmra.mrb[0].mxu0 %v1842
    %v1977 = vpop.f32.mrb[0].mxu0
    %v1978 = vadd.f32 %v1785, %v1977
    %v1979 = vpop.f32.mrb[0].mxu0
    %1980 = vmatprep.mubr.f32.mxu0 0.0
    %1981 = vmatmul.mubr.f32.gmra.mrb[0].mxu0 %v1845
    %v1982 = vpop.f32.mrb[0].mxu0
    %v1983 = vadd.f32 %v1790, %v1982
    %v1984 = vpop.f32.mrb[0].mxu0
    %1985 = vmatprep.mubr.f32.mxu0 0.0
    %1986 = vmatmul.mubr.f32.gmra.mrb[0].mxu0 %v1848
    %v1987 = vpop.f32.mrb[0].mxu0
    %v1988 = vadd.f32 %v1795, %v1987
    %v1989 = vpop.f32.mrb[0].mxu0
    %1990 = vmatprep.mubr.f32.mxu0 0.0
    %1991 = vmatmul.mubr.f32.gmra.mrb[0].mxu0 %v1851
    %v1992 = vpop.f32.mrb[0].mxu0
    %v1993 = vadd.f32 %v1800, %v1992
    %v1994 = vpop.f32.mrb[0].mxu0
    %1995 = vmatprep.mubr.f32.mxu0 0.0
    %1996 = vmatmul.mubr.f32.gmra.mrb[0].mxu0 %v1854
    %v1997 = vpop.f32.mrb[0].mxu0
    %v1998 = vadd.f32 %v1805, %v1997
    %v1999 = vpop.f32.mrb[0].mxu0
    %2000 = vdwg.mxu0
    %vm2001 = vcmask 64512
    %v2003 = vsel %vm2001, %v1599, 0
    %v2006 = vsel %vm2001, %v1600, 0
    %v2009 = vsel %vm2001, %v1601, 0
    %v2012 = vsel %vm2001, %v1602, 0
    %v2015 = vsel %vm2001, %v1603, 0
    %v2018 = vsel %vm2001, %v1604, 0
    %v2021 = vsel %vm2001, %v1605, 0
    %v2024 = vsel %vm2001, %v1606, 0
    %v2027 = vsel %vm2001, %v1607, 0
    %v2030 = vsel %vm2001, %v1608, 0
    %v2033 = vsel %vm2001, %v1609, 0
    %v2036 = vsel %vm2001, %v1610, 0
    %v2039 = vsel %vm2001, %v1611, 0
    %v2042 = vsel %vm2001, %v1612, 0
    %v2045 = vsel %vm2001, %v1613, 0
    %v2048 = vsel %vm2001, %v1614, 0
    %2050 = vmatprep.subr.mxu0 0.0
    %2051 = vmatpush1.msra.mxu0 %v1339
    %2052 = vmatprep.subr.mxu0 0.0
    %2053 = vmatpush1.msra.mxu0 0.0
    %2054 = vmatprep.subr.mxu0 0.0
    %2055 = vmatpush1.msra.mxu0 0.0
    %2056 = vmatprep.subr.mxu0 0.0
    %2057 = vmatpush1.msra.mxu0 0.0
    %2058 = vmatprep.subr.mxu0 0.0
    %2059 = vmatpush1.msra.mxu0 0.0
    %2060 = vmatprep.subr.mxu0 0.0
    %2061 = vmatpush1.msra.mxu0 0.0
    %2062 = vmatprep.subr.mxu0 0.0
    %2063 = vmatpush1.msra.mxu0 0.0
    %2064 = vmatprep.subr.mxu0 0.0
    %2065 = vmatpush1.msra.mxu0 0.0
    %2066 = vmatprep.subr.mxu0 0.0
    %2067 = vmatpush1.msra.mxu0 0.0
    %2068 = vmatprep.subr.mxu0 0.0
    %2069 = vmatpush1.msra.mxu0 0.0
    %2070 = vmatprep.subr.mxu0 0.0
    %2071 = vmatpush1.msra.mxu0 0.0
    %2072 = vmatprep.subr.mxu0 0.0
    %2073 = vmatpush1.msra.mxu0 0.0
    %2074 = vmatprep.subr.mxu0 0.0
    %2075 = vmatpush1.msra.mxu0 0.0
    %2076 = vmatprep.subr.mxu0 0.0
    %2077 = vmatpush1.msra.mxu0 0.0
    %2078 = vmatprep.subr.mxu0 0.0
    %2079 = vmatpush1.msra.mxu0 0.0
    %2080 = vmatprep.subr.mxu0 0.0
    %2081 = vmatpush1.msra.mxu0 0.0
    %2082 = vmatprep.subr.mxu0 0.0
    %2083 = vmatpush1.msra.mxu0 0.0
    %2084 = vmatprep.subr.mxu0 0.0
    %2085 = vmatpush1.msra.mxu0 0.0
    %2086 = vmatprep.subr.mxu0 0.0
    %2087 = vmatpush1.msra.mxu0 0.0
    %2088 = vmatprep.subr.mxu0 0.0
    %2089 = vmatpush1.msra.mxu0 0.0
    %2090 = vmatprep.subr.mxu0 0.0
    %2091 = vmatpush1.msra.mxu0 0.0
    %2092 = vmatprep.subr.mxu0 0.0
    %2093 = vmatpush1.msra.mxu0 0.0
    %2094 = vmatprep.subr.mxu0 0.0
    %2095 = vmatpush1.msra.mxu0 0.0
    %2096 = vmatprep.subr.mxu0 0.0
    %2097 = vmatpush1.msra.mxu0 0.0
    %2098 = vmatprep.subr.mxu0 0.0
    %2099 = vmatpush1.msra.mxu0 0.0
    %2100 = vmatprep.subr.mxu0 0.0
    %2101 = vmatpush1.msra.mxu0 0.0
    %2102 = vmatprep.subr.mxu0 0.0
    %2103 = vmatpush1.msra.mxu0 0.0
    %2104 = vmatprep.subr.mxu0 0.0
    %2105 = vmatpush1.msra.mxu0 0.0
    %2106 = vmatprep.subr.mxu0 0.0
    %2107 = vmatpush1.msra.mxu0 0.0
    %2108 = vmatprep.subr.mxu0 0.0
    %2109 = vmatpush1.msra.mxu0 0.0
    %2110 = vmatprep.subr.mxu0 0.0
    %2111 = vmatpush1.msra.mxu0 0.0
    %2112 = vmatprep.subr.mxu0 0.0
    %2113 = vmatpush1.msra.mxu0 0.0
    %2114 = vmatprep.mubr.f32.mxu0 0.0
    %2115 = vmatmul.mubr.f32.gmra.mrb[0].mxu0 %v2003
    %v2116 = vpop.f32.mrb[0].mxu0
    %v2117 = vadd.f32 0.0, %v2116
    %v2118 = vpop.f32.mrb[0].mxu0
    %2119 = vmatprep.mubr.f32.mxu0 0.0
    %2120 = vmatmul.mubr.f32.gmra.mrb[0].mxu0 %v2006
    %v2121 = vpop.f32.mrb[0].mxu0
    %v2122 = vadd.f32 0.0, %v2121
    %v2123 = vpop.f32.mrb[0].mxu0
    %2124 = vmatprep.mubr.f32.mxu0 0.0
    %2125 = vmatmul.mubr.f32.gmra.mrb[0].mxu0 %v2009
    %v2126 = vpop.f32.mrb[0].mxu0
    %v2127 = vadd.f32 0.0, %v2126
    %v2128 = vpop.f32.mrb[0].mxu0
    %2129 = vmatprep.mubr.f32.mxu0 0.0
    %2130 = vmatmul.mubr.f32.gmra.mrb[0].mxu0 %v2012
    %v2131 = vpop.f32.mrb[0].mxu0
    %v2132 = vadd.f32 0.0, %v2131
    %v2133 = vpop.f32.mrb[0].mxu0
    %2134 = vmatprep.mubr.f32.mxu0 0.0
    %2135 = vmatmul.mubr.f32.gmra.mrb[0].mxu0 %v2015
    %v2136 = vpop.f32.mrb[0].mxu0
    %v2137 = vadd.f32 0.0, %v2136
    %v2138 = vpop.f32.mrb[0].mxu0
    %2139 = vmatprep.mubr.f32.mxu0 0.0
    %2140 = vmatmul.mubr.f32.gmra.mrb[0].mxu0 %v2018
    %v2141 = vpop.f32.mrb[0].mxu0
    %v2142 = vadd.f32 0.0, %v2141
    %v2143 = vpop.f32.mrb[0].mxu0
    %2144 = vmatprep.mubr.f32.mxu0 0.0
    %2145 = vmatmul.mubr.f32.gmra.mrb[0].mxu0 %v2021
    %v2146 = vpop.f32.mrb[0].mxu0
    %v2147 = vadd.f32 0.0, %v2146
    %v2148 = vpop.f32.mrb[0].mxu0
    %2149 = vmatprep.mubr.f32.mxu0 0.0
    %2150 = vmatmul.mubr.f32.gmra.mrb[0].mxu0 %v2024
    %v2151 = vpop.f32.mrb[0].mxu0
    %v2152 = vadd.f32 0.0, %v2151
    %v2153 = vpop.f32.mrb[0].mxu0
    %2154 = vmatprep.mubr.f32.mxu0 0.0
    %2155 = vmatmul.mubr.f32.gmra.mrb[0].mxu0 %v2027
    %v2156 = vpop.f32.mrb[0].mxu0
    %v2157 = vadd.f32 0.0, %v2156
    %v2158 = vpop.f32.mrb[0].mxu0
    %2159 = vmatprep.mubr.f32.mxu0 0.0
    %2160 = vmatmul.mubr.f32.gmra.mrb[0].mxu0 %v2030
    %v2161 = vpop.f32.mrb[0].mxu0
    %v2162 = vadd.f32 0.0, %v2161
    %v2163 = vpop.f32.mrb[0].mxu0
    %2164 = vmatprep.mubr.f32.mxu0 0.0
    %2165 = vmatmul.mubr.f32.gmra.mrb[0].mxu0 %v2033
    %v2166 = vpop.f32.mrb[0].mxu0
    %v2167 = vadd.f32 0.0, %v2166
    %v2168 = vpop.f32.mrb[0].mxu0
    %2169 = vmatprep.mubr.f32.mxu0 0.0
    %2170 = vmatmul.mubr.f32.gmra.mrb[0].mxu0 %v2036
    %v2171 = vpop.f32.mrb[0].mxu0
    %v2172 = vadd.f32 0.0, %v2171
    %v2173 = vpop.f32.mrb[0].mxu0
    %2174 = vmatprep.mubr.f32.mxu0 0.0
    %2175 = vmatmul.mubr.f32.gmra.mrb[0].mxu0 %v2039
    %v2176 = vpop.f32.mrb[0].mxu0
    %v2177 = vadd.f32 0.0, %v2176
    %v2178 = vpop.f32.mrb[0].mxu0
    %2179 = vmatprep.mubr.f32.mxu0 0.0
    %2180 = vmatmul.mubr.f32.gmra.mrb[0].mxu0 %v2042
    %v2181 = vpop.f32.mrb[0].mxu0
    %v2182 = vadd.f32 0.0, %v2181
    %v2183 = vpop.f32.mrb[0].mxu0
    %2184 = vmatprep.mubr.f32.mxu0 0.0
    %2185 = vmatmul.mubr.f32.gmra.mrb[0].mxu0 %v2045
    %v2186 = vpop.f32.mrb[0].mxu0
    %v2187 = vadd.f32 0.0, %v2186
    %v2188 = vpop.f32.mrb[0].mxu0
    %2189 = vmatprep.mubr.f32.mxu0 0.0
    %2190 = vmatmul.mubr.f32.gmra.mrb[0].mxu0 %v2048
    %v2191 = vpop.f32.mrb[0].mxu0
    %v2192 = vadd.f32 0.0, %v2191
    %v2193 = vpop.f32.mrb[0].mxu0
    %2194 = vdwg.mxu0
    %v2195 = vadd.f32 %v1923, %v2117
    %v2196 = vadd.f32 %v1928, %v2122
    %v2197 = vadd.f32 %v1933, %v2127
    %v2198 = vadd.f32 %v1938, %v2132
    %v2199 = vadd.f32 %v1943, %v2137
    %v2200 = vadd.f32 %v1948, %v2142
    %v2201 = vadd.f32 %v1953, %v2147
    %v2202 = vadd.f32 %v1958, %v2152
    %v2203 = vadd.f32 %v1963, %v2157
    %v2204 = vadd.f32 %v1968, %v2162
    %v2205 = vadd.f32 %v1973, %v2167
    %v2206 = vadd.f32 %v1978, %v2172
    %v2207 = vadd.f32 %v1983, %v2177
    %v2208 = vadd.f32 %v1988, %v2182
    %v2209 = vadd.f32 %v1993, %v2187
    %v2210 = vadd.f32 %v1998, %v2192
    %v2211 = vmax.f32 %v2195, 0.0
    %v2212 = vmax.f32 %v2196, 0.0
    %v2213 = vmax.f32 %v2197, 0.0
    %v2214 = vmax.f32 %v2198, 0.0
    %v2215 = vmax.f32 %v2199, 0.0
    %v2216 = vmax.f32 %v2200, 0.0
    %v2217 = vmax.f32 %v2201, 0.0
    %v2218 = vmax.f32 %v2202, 0.0
    %v2219 = vmax.f32 %v2203, 0.0
    %v2220 = vmax.f32 %v2204, 0.0
    %v2221 = vmax.f32 %v2205, 0.0
    %v2222 = vmax.f32 %v2206, 0.0
    %v2223 = vmax.f32 %v2207, 0.0
    %v2224 = vmax.f32 %v2208, 0.0
    %v2225 = vmax.f32 %v2209, 0.0
    %v2226 = vmax.f32 %v2210, 0.0
    %v2227 = vlaneseq
    %v2228 = vshrl.u32 %v2227, 7
    %v2229 = vsub.s32 0, %v2228
    %v2230 = vrot.slane %v61, %v2229
    %2231 = vmatprep.subr.mxu0 0.0
    %2232 = vmatpush1.msra.mxu0 %v45
    %2233 = vmatprep.subr.mxu0 0.0
    %2234 = vmatpush1.msra.mxu0 %v46
    %2235 = vmatprep.subr.mxu0 0.0
    %2236 = vmatpush1.msra.mxu0 %v47
    %2237 = vmatprep.subr.mxu0 0.0
    %2238 = vmatpush1.msra.mxu0 %v48
    %2239 = vmatprep.subr.mxu0 0.0
    %2240 = vmatpush1.msra.mxu0 %v49
    %2241 = vmatprep.subr.mxu0 0.0
    %2242 = vmatpush1.msra.mxu0 %v50
    %2243 = vmatprep.subr.mxu0 0.0
    %2244 = vmatpush1.msra.mxu0 %v51
    %2245 = vmatprep.subr.mxu0 0.0
    %2246 = vmatpush1.msra.mxu0 %v52
    %2247 = vmatprep.subr.mxu0 0.0
    %2248 = vmatpush1.msra.mxu0 %v53
    %2249 = vmatprep.subr.mxu0 0.0
    %2250 = vmatpush1.msra.mxu0 %v54
    %2251 = vmatprep.subr.mxu0 0.0
    %2252 = vmatpush1.msra.mxu0 %v55
    %2253 = vmatprep.subr.mxu0 0.0
    %2254 = vmatpush1.msra.mxu0 %v56
    %2255 = vmatprep.subr.mxu0 0.0
    %2256 = vmatpush1.msra.mxu0 %v57
    %2257 = vmatprep.subr.mxu0 0.0
    %2258 = vmatpush1.msra.mxu0 %v58
    %2259 = vmatprep.subr.mxu0 0.0
    %2260 = vmatpush1.msra.mxu0 %v59
    %2261 = vmatprep.subr.mxu0 0.0
    %2262 = vmatpush1.msra.mxu0 %v60
    %2263 = vmatprep.subr.mxu0 0.0
    %2264 = vmatpush1.msra.mxu0 0.0
    %2265 = vmatprep.subr.mxu0 0.0
    %2266 = vmatpush1.msra.mxu0 0.0
    %2267 = vmatprep.subr.mxu0 0.0
    %2268 = vmatpush1.msra.mxu0 0.0
    %2269 = vmatprep.subr.mxu0 0.0
    %2270 = vmatpush1.msra.mxu0 0.0
    %2271 = vmatprep.subr.mxu0 0.0
    %2272 = vmatpush1.msra.mxu0 0.0
    %2273 = vmatprep.subr.mxu0 0.0
    %2274 = vmatpush1.msra.mxu0 0.0
    %2275 = vmatprep.subr.mxu0 0.0
    %2276 = vmatpush1.msra.mxu0 0.0
    %2277 = vmatprep.subr.mxu0 0.0
    %2278 = vmatpush1.msra.mxu0 0.0
    %2279 = vmatprep.subr.mxu0 0.0
    %2280 = vmatpush1.msra.mxu0 0.0
    %2281 = vmatprep.subr.mxu0 0.0
    %2282 = vmatpush1.msra.mxu0 0.0
    %2283 = vmatprep.subr.mxu0 0.0
    %2284 = vmatpush1.msra.mxu0 0.0
    %2285 = vmatprep.subr.mxu0 0.0
    %2286 = vmatpush1.msra.mxu0 0.0
    %2287 = vmatprep.subr.mxu0 0.0
    %2288 = vmatpush1.msra.mxu0 0.0
    %2289 = vmatprep.subr.mxu0 0.0
    %2290 = vmatpush1.msra.mxu0 0.0
    %2291 = vmatprep.subr.mxu0 0.0
    %2292 = vmatpush1.msra.mxu0 0.0
    %2293 = vmatprep.subr.mxu0 0.0
    %2294 = vmatpush1.msra.mxu0 0.0
    %2295 = vmatprep.mubr.f32.mxu0 0.0
    %2296 = vmatmul.mubr.f32.gmra.mrb[0].mxu0 %v2211
    %v2297 = vpop.f32.mrb[0].mxu0
    %v2298 = vadd.f32 %v2230, %v2297
    %v2299 = vpop.f32.mrb[0].mxu0
    %2300 = vmatprep.mubr.f32.mxu0 0.0
    %2301 = vmatmul.mubr.f32.gmra.mrb[0].mxu0 %v2212
    %v2302 = vpop.f32.mrb[0].mxu0
    %v2303 = vadd.f32 %v2230, %v2302
    %v2304 = vpop.f32.mrb[0].mxu0
    %2305 = vmatprep.mubr.f32.mxu0 0.0
    %2306 = vmatmul.mubr.f32.gmra.mrb[0].mxu0 %v2213
    %v2307 = vpop.f32.mrb[0].mxu0
    %v2308 = vadd.f32 %v2230, %v2307
    %v2309 = vpop.f32.mrb[0].mxu0
    %2310 = vmatprep.mubr.f32.mxu0 0.0
    %2311 = vmatmul.mubr.f32.gmra.mrb[0].mxu0 %v2214
    %v2312 = vpop.f32.mrb[0].mxu0
    %v2313 = vadd.f32 %v2230, %v2312
    %v2314 = vpop.f32.mrb[0].mxu0
    %2315 = vmatprep.mubr.f32.mxu0 0.0
    %2316 = vmatmul.mubr.f32.gmra.mrb[0].mxu0 %v2215
    %v2317 = vpop.f32.mrb[0].mxu0
    %v2318 = vadd.f32 %v2230, %v2317
    %v2319 = vpop.f32.mrb[0].mxu0
    %2320 = vmatprep.mubr.f32.mxu0 0.0
    %2321 = vmatmul.mubr.f32.gmra.mrb[0].mxu0 %v2216
    %v2322 = vpop.f32.mrb[0].mxu0
    %v2323 = vadd.f32 %v2230, %v2322
    %v2324 = vpop.f32.mrb[0].mxu0
    %2325 = vmatprep.mubr.f32.mxu0 0.0
    %2326 = vmatmul.mubr.f32.gmra.mrb[0].mxu0 %v2217
    %v2327 = vpop.f32.mrb[0].mxu0
    %v2328 = vadd.f32 %v2230, %v2327
    %v2329 = vpop.f32.mrb[0].mxu0
    %2330 = vmatprep.mubr.f32.mxu0 0.0
    %2331 = vmatmul.mubr.f32.gmra.mrb[0].mxu0 %v2218
    %v2332 = vpop.f32.mrb[0].mxu0
    %v2333 = vadd.f32 %v2230, %v2332
    %v2334 = vpop.f32.mrb[0].mxu0
    %2335 = vmatprep.mubr.f32.mxu0 0.0
    %2336 = vmatmul.mubr.f32.gmra.mrb[0].mxu0 %v2219
    %v2337 = vpop.f32.mrb[0].mxu0
    %v2338 = vadd.f32 %v2230, %v2337
    %v2339 = vpop.f32.mrb[0].mxu0
    %2340 = vmatprep.mubr.f32.mxu0 0.0
    %2341 = vmatmul.mubr.f32.gmra.mrb[0].mxu0 %v2220
    %v2342 = vpop.f32.mrb[0].mxu0
    %v2343 = vadd.f32 %v2230, %v2342
    %v2344 = vpop.f32.mrb[0].mxu0
    %2345 = vmatprep.mubr.f32.mxu0 0.0
    %2346 = vmatmul.mubr.f32.gmra.mrb[0].mxu0 %v2221
    %v2347 = vpop.f32.mrb[0].mxu0
    %v2348 = vadd.f32 %v2230, %v2347
    %v2349 = vpop.f32.mrb[0].mxu0
    %2350 = vmatprep.mubr.f32.mxu0 0.0
    %2351 = vmatmul.mubr.f32.gmra.mrb[0].mxu0 %v2222
    %v2352 = vpop.f32.mrb[0].mxu0
    %v2353 = vadd.f32 %v2230, %v2352
    %v2354 = vpop.f32.mrb[0].mxu0
    %2355 = vmatprep.mubr.f32.mxu0 0.0
    %2356 = vmatmul.mubr.f32.gmra.mrb[0].mxu0 %v2223
    %v2357 = vpop.f32.mrb[0].mxu0
    %v2358 = vadd.f32 %v2230, %v2357
    %v2359 = vpop.f32.mrb[0].mxu0
    %2360 = vmatprep.mubr.f32.mxu0 0.0
    %2361 = vmatmul.mubr.f32.gmra.mrb[0].mxu0 %v2224
    %v2362 = vpop.f32.mrb[0].mxu0
    %v2363 = vadd.f32 %v2230, %v2362
    %v2364 = vpop.f32.mrb[0].mxu0
    %2365 = vmatprep.mubr.f32.mxu0 0.0
    %2366 = vmatmul.mubr.f32.gmra.mrb[0].mxu0 %v2225
    %v2367 = vpop.f32.mrb[0].mxu0
    %v2368 = vadd.f32 %v2230, %v2367
    %v2369 = vpop.f32.mrb[0].mxu0
    %2370 = vmatprep.mubr.f32.mxu0 0.0
    %2371 = vmatmul.mubr.f32.gmra.mrb[0].mxu0 %v2226
    %v2372 = vpop.f32.mrb[0].mxu0
    %v2373 = vadd.f32 %v2230, %v2372
    %v2374 = vpop.f32.mrb[0].mxu0
    %2375 = vdwg.mxu0
    %v2376 = vmax.f32 %v2298, 0.0
    %v2377 = vmax.f32 %v2303, 0.0
    %v2378 = vmax.f32 %v2308, 0.0
    %v2379 = vmax.f32 %v2313, 0.0
    %v2380 = vmax.f32 %v2318, 0.0
    %v2381 = vmax.f32 %v2323, 0.0
    %v2382 = vmax.f32 %v2328, 0.0
    %v2383 = vmax.f32 %v2333, 0.0
    %v2384 = vmax.f32 %v2338, 0.0
    %v2385 = vmax.f32 %v2343, 0.0
    %v2386 = vmax.f32 %v2348, 0.0
    %v2387 = vmax.f32 %v2353, 0.0
    %v2388 = vmax.f32 %v2358, 0.0
    %v2389 = vmax.f32 %v2363, 0.0
    %v2390 = vmax.f32 %v2368, 0.0
    %v2391 = vmax.f32 %v2373, 0.0
    %v2392 = vshra.s32 %v122, 6
    %vm2393 = vcmp.eq.s32.totalorder %v1343, %v2392
    %v2394 = vsel %vm2393, 1, 0
    %v2395 = vcvt.s32.f32 %v2394
    %2396 = vmatprep.subr.mxu0 0.0
    %2397 = vmatpush1.msra.mxu0 %v2376
    %2398 = vmatprep.subr.mxu0 0.0
    %2399 = vmatpush1.msra.mxu0 %v2377
    %2400 = vmatprep.subr.mxu0 0.0
    %2401 = vmatpush1.msra.mxu0 %v2378
    %2402 = vmatprep.subr.mxu0 0.0
    %2403 = vmatpush1.msra.mxu0 %v2379
    %2404 = vmatprep.subr.mxu0 0.0
    %2405 = vmatpush1.msra.mxu0 %v2380
    %2406 = vmatprep.subr.mxu0 0.0
    %2407 = vmatpush1.msra.mxu0 %v2381
    %2408 = vmatprep.subr.mxu0 0.0
    %2409 = vmatpush1.msra.mxu0 %v2382
    %2410 = vmatprep.subr.mxu0 0.0
    %2411 = vmatpush1.msra.mxu0 %v2383
    %2412 = vmatprep.subr.mxu0 0.0
    %2413 = vmatpush1.msra.mxu0 %v2384
    %2414 = vmatprep.subr.mxu0 0.0
    %2415 = vmatpush1.msra.mxu0 %v2385
    %2416 = vmatprep.subr.mxu0 0.0
    %2417 = vmatpush1.msra.mxu0 %v2386
    %2418 = vmatprep.subr.mxu0 0.0
    %2419 = vmatpush1.msra.mxu0 %v2387
    %2420 = vmatprep.subr.mxu0 0.0
    %2421 = vmatpush1.msra.mxu0 %v2388
    %2422 = vmatprep.subr.mxu0 0.0
    %2423 = vmatpush1.msra.mxu0 %v2389
    %2424 = vmatprep.subr.mxu0 0.0
    %2425 = vmatpush1.msra.mxu0 %v2390
    %2426 = vmatprep.subr.mxu0 0.0
    %2427 = vmatpush1.msra.mxu0 %v2391
    %2428 = vmatprep.subr.mxu0 0.0
    %2429 = vmatpush1.msra.mxu0 0.0
    %2430 = vmatprep.subr.mxu0 0.0
    %2431 = vmatpush1.msra.mxu0 0.0
    %2432 = vmatprep.subr.mxu0 0.0
    %2433 = vmatpush1.msra.mxu0 0.0
    %2434 = vmatprep.subr.mxu0 0.0
    %2435 = vmatpush1.msra.mxu0 0.0
    %2436 = vmatprep.subr.mxu0 0.0
    %2437 = vmatpush1.msra.mxu0 0.0
    %2438 = vmatprep.subr.mxu0 0.0
    %2439 = vmatpush1.msra.mxu0 0.0
    %2440 = vmatprep.subr.mxu0 0.0
    %2441 = vmatpush1.msra.mxu0 0.0
    %2442 = vmatprep.subr.mxu0 0.0
    %2443 = vmatpush1.msra.mxu0 0.0
    %2444 = vmatprep.subr.mxu0 0.0
    %2445 = vmatpush1.msra.mxu0 0.0
    %2446 = vmatprep.subr.mxu0 0.0
    %2447 = vmatpush1.msra.mxu0 0.0
    %2448 = vmatprep.subr.mxu0 0.0
    %2449 = vmatpush1.msra.mxu0 0.0
    %2450 = vmatprep.subr.mxu0 0.0
    %2451 = vmatpush1.msra.mxu0 0.0
    %2452 = vmatprep.subr.mxu0 0.0
    %2453 = vmatpush1.msra.mxu0 0.0
    %2454 = vmatprep.subr.mxu0 0.0
    %2455 = vmatpush1.msra.mxu0 0.0
    %2456 = vmatprep.subr.mxu0 0.0
    %2457 = vmatpush1.msra.mxu0 0.0
    %2458 = vmatprep.subr.mxu0 0.0
    %2459 = vmatpush1.msra.mxu0 0.0
    %2460 = vmatprep.mubr.f32.mxu0 0.0
    %2461 = vmatmul.mubr.f32.gmra.mrb[0].mxu0 %v2395
    %v2462 = vpop.f32.mrb[0].mxu0
    %v2463 = vadd.f32 0.0, %v2462
    %v2464 = vpop.f32.mrb[0].mxu0
    %2465 = vdwg.mxu0
    %v2466 = vlaneseq
    %v2467 = vshrl.u32 %v2466, 7
    %v2468 = vsub.s32 0, %v2467
    %v2469 = vrot.slane %v78, %v2468
    %2470 = vmatprep.subr.mxu0 0.0
    %2471 = vmatpush1.msra.mxu0 %v62
    %2472 = vmatprep.subr.mxu0 0.0
    %2473 = vmatpush1.msra.mxu0 %v63
    %2474 = vmatprep.subr.mxu0 0.0
    %2475 = vmatpush1.msra.mxu0 %v64
    %2476 = vmatprep.subr.mxu0 0.0
    %2477 = vmatpush1.msra.mxu0 %v65
    %2478 = vmatprep.subr.mxu0 0.0
    %2479 = vmatpush1.msra.mxu0 %v66
    %2480 = vmatprep.subr.mxu0 0.0
    %2481 = vmatpush1.msra.mxu0 %v67
    %2482 = vmatprep.subr.mxu0 0.0
    %2483 = vmatpush1.msra.mxu0 %v68
    %2484 = vmatprep.subr.mxu0 0.0
    %2485 = vmatpush1.msra.mxu0 %v69
    %2486 = vmatprep.subr.mxu0 0.0
    %2487 = vmatpush1.msra.mxu0 %v70
    %2488 = vmatprep.subr.mxu0 0.0
    %2489 = vmatpush1.msra.mxu0 %v71
    %2490 = vmatprep.subr.mxu0 0.0
    %2491 = vmatpush1.msra.mxu0 %v72
    %2492 = vmatprep.subr.mxu0 0.0
    %2493 = vmatpush1.msra.mxu0 %v73
    %2494 = vmatprep.subr.mxu0 0.0
    %2495 = vmatpush1.msra.mxu0 %v74
    %2496 = vmatprep.subr.mxu0 0.0
    %2497 = vmatpush1.msra.mxu0 %v75
    %2498 = vmatprep.subr.mxu0 0.0
    %2499 = vmatpush1.msra.mxu0 %v76
    %2500 = vmatprep.subr.mxu0 0.0
    %2501 = vmatpush1.msra.mxu0 %v77
    %2502 = vmatprep.subr.mxu0 0.0
    %2503 = vmatpush1.msra.mxu0 0.0
    %2504 = vmatprep.subr.mxu0 0.0
    %2505 = vmatpush1.msra.mxu0 0.0
    %2506 = vmatprep.subr.mxu0 0.0
    %2507 = vmatpush1.msra.mxu0 0.0
    %2508 = vmatprep.subr.mxu0 0.0
    %2509 = vmatpush1.msra.mxu0 0.0
    %2510 = vmatprep.subr.mxu0 0.0
    %2511 = vmatpush1.msra.mxu0 0.0
    %2512 = vmatprep.subr.mxu0 0.0
    %2513 = vmatpush1.msra.mxu0 0.0
    %2514 = vmatprep.subr.mxu0 0.0
    %2515 = vmatpush1.msra.mxu0 0.0
    %2516 = vmatprep.subr.mxu0 0.0
    %2517 = vmatpush1.msra.mxu0 0.0
    %2518 = vmatprep.subr.mxu0 0.0
    %2519 = vmatpush1.msra.mxu0 0.0
    %2520 = vmatprep.subr.mxu0 0.0
    %2521 = vmatpush1.msra.mxu0 0.0
    %2522 = vmatprep.subr.mxu0 0.0
    %2523 = vmatpush1.msra.mxu0 0.0
    %2524 = vmatprep.subr.mxu0 0.0
    %2525 = vmatpush1.msra.mxu0 0.0
    %2526 = vmatprep.subr.mxu0 0.0
    %2527 = vmatpush1.msra.mxu0 0.0
    %2528 = vmatprep.subr.mxu0 0.0
    %2529 = vmatpush1.msra.mxu0 0.0
    %2530 = vmatprep.subr.mxu0 0.0
    %2531 = vmatpush1.msra.mxu0 0.0
    %2532 = vmatprep.subr.mxu0 0.0
    %2533 = vmatpush1.msra.mxu0 0.0
    %2534 = vmatprep.mubr.f32.mxu0 0.0
    %2535 = vmatmul.mubr.f32.gmra.mrb[0].mxu0 %v2463
    %v2536 = vpop.f32.mrb[0].mxu0
    %v2537 = vadd.f32 %v2469, %v2536
    %v2538 = vpop.f32.mrb[0].mxu0
    %2539 = vdwg.mxu0
    %v2540 = vmax.f32 %v2537, 0.0
    %v2541 = vlaneseq
    %v2542 = vshrl.u32 %v2541, 7
    %v2543 = vsub.s32 0, %v2542
    %v2544 = vrot.slane %v95, %v2543
    %2545 = vmatprep.subr.mxu0 0.0
    %2546 = vmatpush1.msra.mxu0 %v79
    %2547 = vmatprep.subr.mxu0 0.0
    %2548 = vmatpush1.msra.mxu0 %v80
    %2549 = vmatprep.subr.mxu0 0.0
    %2550 = vmatpush1.msra.mxu0 %v81
    %2551 = vmatprep.subr.mxu0 0.0
    %2552 = vmatpush1.msra.mxu0 %v82
    %2553 = vmatprep.subr.mxu0 0.0
    %2554 = vmatpush1.msra.mxu0 %v83
    %2555 = vmatprep.subr.mxu0 0.0
    %2556 = vmatpush1.msra.mxu0 %v84
    %2557 = vmatprep.subr.mxu0 0.0
    %2558 = vmatpush1.msra.mxu0 %v85
    %2559 = vmatprep.subr.mxu0 0.0
    %2560 = vmatpush1.msra.mxu0 %v86
    %2561 = vmatprep.subr.mxu0 0.0
    %2562 = vmatpush1.msra.mxu0 %v87
    %2563 = vmatprep.subr.mxu0 0.0
    %2564 = vmatpush1.msra.mxu0 %v88
    %2565 = vmatprep.subr.mxu0 0.0
    %2566 = vmatpush1.msra.mxu0 %v89
    %2567 = vmatprep.subr.mxu0 0.0
    %2568 = vmatpush1.msra.mxu0 %v90
    %2569 = vmatprep.subr.mxu0 0.0
    %2570 = vmatpush1.msra.mxu0 %v91
    %2571 = vmatprep.subr.mxu0 0.0
    %2572 = vmatpush1.msra.mxu0 %v92
    %2573 = vmatprep.subr.mxu0 0.0
    %2574 = vmatpush1.msra.mxu0 %v93
    %2575 = vmatprep.subr.mxu0 0.0
    %2576 = vmatpush1.msra.mxu0 %v94
    %2577 = vmatprep.subr.mxu0 0.0
    %2578 = vmatpush1.msra.mxu0 0.0
    %2579 = vmatprep.subr.mxu0 0.0
    %2580 = vmatpush1.msra.mxu0 0.0
    %2581 = vmatprep.subr.mxu0 0.0
    %2582 = vmatpush1.msra.mxu0 0.0
    %2583 = vmatprep.subr.mxu0 0.0
    %2584 = vmatpush1.msra.mxu0 0.0
    %2585 = vmatprep.subr.mxu0 0.0
    %2586 = vmatpush1.msra.mxu0 0.0
    %2587 = vmatprep.subr.mxu0 0.0
    %2588 = vmatpush1.msra.mxu0 0.0
    %2589 = vmatprep.subr.mxu0 0.0
    %2590 = vmatpush1.msra.mxu0 0.0
    %2591 = vmatprep.subr.mxu0 0.0
    %2592 = vmatpush1.msra.mxu0 0.0
    %2593 = vmatprep.subr.mxu0 0.0
    %2594 = vmatpush1.msra.mxu0 0.0
    %2595 = vmatprep.subr.mxu0 0.0
    %2596 = vmatpush1.msra.mxu0 0.0
    %2597 = vmatprep.subr.mxu0 0.0
    %2598 = vmatpush1.msra.mxu0 0.0
    %2599 = vmatprep.subr.mxu0 0.0
    %2600 = vmatpush1.msra.mxu0 0.0
    %2601 = vmatprep.subr.mxu0 0.0
    %2602 = vmatpush1.msra.mxu0 0.0
    %2603 = vmatprep.subr.mxu0 0.0
    %2604 = vmatpush1.msra.mxu0 0.0
    %2605 = vmatprep.subr.mxu0 0.0
    %2606 = vmatpush1.msra.mxu0 0.0
    %2607 = vmatprep.subr.mxu0 0.0
    %2608 = vmatpush1.msra.mxu0 0.0
    %2609 = vmatprep.mubr.f32.mxu0 0.0
    %2610 = vmatmul.mubr.f32.gmra.mrb[0].mxu0 %v2540
    %v2611 = vpop.f32.mrb[0].mxu0
    %v2612 = vadd.f32 %v2544, %v2611
    %v2613 = vpop.f32.mrb[0].mxu0
    %2614 = vdwg.mxu0
    %v2615 = vmax.f32 %v2612, 0.0
    %v2616 = vlaneseq
    %v2617 = vshrl.u32 %v2616, 7
    %v2618 = vsub.s32 0, %v2617
    %v2619 = vrot.slane %v112, %v2618
    %2620 = vmatprep.subr.mxu0 0.0
    %2621 = vmatpush1.msra.mxu0 %v96
    %2622 = vmatprep.subr.mxu0 0.0
    %2623 = vmatpush1.msra.mxu0 %v97
    %2624 = vmatprep.subr.mxu0 0.0
    %2625 = vmatpush1.msra.mxu0 %v98
    %2626 = vmatprep.subr.mxu0 0.0
    %2627 = vmatpush1.msra.mxu0 %v99
    %2628 = vmatprep.subr.mxu0 0.0
    %2629 = vmatpush1.msra.mxu0 %v100
    %2630 = vmatprep.subr.mxu0 0.0
    %2631 = vmatpush1.msra.mxu0 %v101
    %2632 = vmatprep.subr.mxu0 0.0
    %2633 = vmatpush1.msra.mxu0 %v102
    %2634 = vmatprep.subr.mxu0 0.0
    %2635 = vmatpush1.msra.mxu0 %v103
    %2636 = vmatprep.subr.mxu0 0.0
    %2637 = vmatpush1.msra.mxu0 %v104
    %2638 = vmatprep.subr.mxu0 0.0
    %2639 = vmatpush1.msra.mxu0 %v105
    %2640 = vmatprep.subr.mxu0 0.0
    %2641 = vmatpush1.msra.mxu0 %v106
    %2642 = vmatprep.subr.mxu0 0.0
    %2643 = vmatpush1.msra.mxu0 %v107
    %2644 = vmatprep.subr.mxu0 0.0
    %2645 = vmatpush1.msra.mxu0 %v108
    %2646 = vmatprep.subr.mxu0 0.0
    %2647 = vmatpush1.msra.mxu0 %v109
    %2648 = vmatprep.subr.mxu0 0.0
    %2649 = vmatpush1.msra.mxu0 %v110
    %2650 = vmatprep.subr.mxu0 0.0
    %2651 = vmatpush1.msra.mxu0 %v111
    %2652 = vmatprep.subr.mxu0 0.0
    %2653 = vmatpush1.msra.mxu0 0.0
    %2654 = vmatprep.subr.mxu0 0.0
    %2655 = vmatpush1.msra.mxu0 0.0
    %2656 = vmatprep.subr.mxu0 0.0
    %2657 = vmatpush1.msra.mxu0 0.0
    %2658 = vmatprep.subr.mxu0 0.0
    %2659 = vmatpush1.msra.mxu0 0.0
    %2660 = vmatprep.subr.mxu0 0.0
    %2661 = vmatpush1.msra.mxu0 0.0
    %2662 = vmatprep.subr.mxu0 0.0
    %2663 = vmatpush1.msra.mxu0 0.0
    %2664 = vmatprep.subr.mxu0 0.0
    %2665 = vmatpush1.msra.mxu0 0.0
    %2666 = vmatprep.subr.mxu0 0.0
    %2667 = vmatpush1.msra.mxu0 0.0
    %2668 = vmatprep.subr.mxu0 0.0
    %2669 = vmatpush1.msra.mxu0 0.0
    %2670 = vmatprep.subr.mxu0 0.0
    %2671 = vmatpush1.msra.mxu0 0.0
    %2672 = vmatprep.subr.mxu0 0.0
    %2673 = vmatpush1.msra.mxu0 0.0
    %2674 = vmatprep.subr.mxu0 0.0
    %2675 = vmatpush1.msra.mxu0 0.0
    %2676 = vmatprep.subr.mxu0 0.0
    %2677 = vmatpush1.msra.mxu0 0.0
    %2678 = vmatprep.subr.mxu0 0.0
    %2679 = vmatpush1.msra.mxu0 0.0
    %2680 = vmatprep.subr.mxu0 0.0
    %2681 = vmatpush1.msra.mxu0 0.0
    %2682 = vmatprep.subr.mxu0 0.0
    %2683 = vmatpush1.msra.mxu0 0.0
    %2684 = vmatprep.mubr.f32.mxu0 0.0
    %2685 = vmatmul.mubr.f32.gmra.mrb[0].mxu0 %v2615
    %v2686 = vpop.f32.mrb[0].mxu0
    %v2687 = vadd.f32 %v2619, %v2686
    %v2688 = vpop.f32.mrb[0].mxu0
    %2689 = vdwg.mxu0
    %2690 = vst [vmem:[%s3] sm:$0xff] %v2687
    // Predicated region
    $region18: #{rn_forward.1} parent=1 // pred_check
      _
    $region19: #{rn_forward.1} parent=1 // pred_check_branch
      %2692 = sbr.rel (0) target = $region21
    $region20: #{rn_forward.1} parent=1 // pred_region
      _
    $region21: #{rn_forward.1} parent=1 // pred_fallthru
      _
    // Predicated region
    $region22: #{rn_forward.1} parent=1 // pred_check
      _
    $region23: #{rn_forward.1} parent=1 // pred_check_branch
      %2694 = sbr.rel (0) target = $region25
    $region24: #{rn_forward.1} parent=1 // pred_region
      _
    $region25: #{rn_forward.1} parent=1 // pred_fallthru
      _
    %2695 = vsyncpa [#allocation3], 1

</llo_original>
